<compile_context>
chip_gen: v7x
topology: tpu7x:2x2x1
jax: 0.10.0
libtpu: 0.0.40
codegen_flags: <defaults>
</compile_context>

<pallas_src>
import jax
import jax.numpy as jnp
from jax import lax
from jax.experimental import pallas as pl
from jax.experimental.pallas import tpu as pltpu


def _round_up(x, m):
    return ((x + m - 1) // m) * m


# ----------------------------- Pallas kernel ---------------------------------
def gru_fc_kernel(x_ref, wih_ref, whh_ref, bih_ref, bhhn_ref, wfc_ref, bfc_ref,
                  emit_ref, gi_scr, hs_scr):
    """Whole-sequence GRU recurrence + FC projection for one batch block.

    x_ref    : (T, Bb, E)      embedded inputs (bf16)
    wih_ref  : (E, 3*Hp)       input->hidden weights, one 128-lane slab per gate (bf16)
    whh_ref  : (Hp, 3*Hp)      hidden->hidden weights, lane-slab layout (bf16)
    bih_ref  : (1, 3*Hp)       b_ih with b_hh_r / b_hh_z folded in (f32)
    bhhn_ref : (1, Hp)         b_hh n-gate component (f32)
    wfc_ref  : (Hp, Cp)        fc weight, zero-padded (bf16)
    bfc_ref  : (1, Cp)         fc bias (f32)
    emit_ref : (T, Bb, Cp)     emission scores (f32, lane-dense)
    gi_scr   : (T, Bb, 3*Hp)   VMEM scratch: hoisted input projection (f32)
    hs_scr   : (T, Bb, Hp)     VMEM scratch: hidden states (bf16)
    """
    T, Bb, E = x_ref.shape
    Hp = whh_ref.shape[0]
    Cp = emit_ref.shape[2]

    # Hoisted input projection for all time steps (one big MXU matmul), staged into VMEM
    # scratch so the time loop does not keep the whole (T*Bb, 3Hp) value live in vregs.
    x2d = x_ref[...].reshape(T * Bb, E)
    gi_scr[...] = (jnp.dot(x2d, wih_ref[...], preferred_element_type=jnp.float32)
                   + bih_ref[...]).reshape(T, Bb, 3 * Hp)

    # Hoist loop-invariant loads / broadcasts out of the serial loop.
    w_hh = whh_ref[...]
    b_hh_n = jnp.broadcast_to(bhhn_ref[...], (Bb, Hp))

    # Serial GRU recurrence: only h @ w_hh cannot be hoisted.
    # TODO(synk): at large T*B, drive the MXU explicitly (pltpu.matmul_push_rhs once before
    # the loop + matmul_acc_lhs per step) so w_hh is not re-pushed every iteration.
    def step(t, h):
        gi = gi_scr[t]                                   # (Bb, 3Hp), lane-tile aligned
        gh = jnp.dot(h.astype(w_hh.dtype), w_hh,
                     preferred_element_type=jnp.float32)
        i_r, i_z, i_n = gi[:, :Hp], gi[:, Hp:2 * Hp], gi[:, 2 * Hp:]
        h_r, h_z, h_n = gh[:, :Hp], gh[:, Hp:2 * Hp], gh[:, 2 * Hp:]
        r = jax.nn.sigmoid(i_r + h_r)                    # gate math in f32 (v5e-safe)
        z = jax.nn.sigmoid(i_z + h_z)
        n = jnp.tanh(i_n + r * (h_n + b_hh_n))           # b_hh_n stays inside r*(...)
        h_new = (1.0 - z) * n + z * h                    # PyTorch GRU update
        hs_scr[t] = h_new.astype(hs_scr.dtype)
        return h_new

    h0 = jnp.zeros((Bb, Hp), jnp.float32)
    lax.fori_loop(0, T, step, h0, unroll=True if T <= 32 else 8)

    # Hoisted FC over all time steps; lane-dense (Cp = multiple of 128) unmasked store.
    hs2d = hs_scr[...].reshape(T * Bb, Hp)
    emit = (jnp.dot(hs2d, wfc_ref[...], preferred_element_type=jnp.float32)
            + bfc_ref[...])
    emit_ref[...] = emit.reshape(T, Bb, Cp)


# ------------------------------- wrapper --------------------------------------
def rnn_crf_forward_pallas(x_ids, params, *, mxu_dtype=jnp.bfloat16, b_block=None):
    """x_ids: (T, B) int32 token ids -> emissions (T, B, C)."""
    emb_table = params["emb"]          # (V, E)
    w_ih = params["w_ih"]              # (E, 3H), gate order r, z, n
    w_hh = params["w_hh"]              # (H, 3H)
    b_ih = params["b_ih"]              # (1, 3H)
    b_hh = params["b_hh"]              # (1, 3H)
    w_fc = params["w_fc"]              # (H, C)
    b_fc = params["b_fc"]              # (1, C)

    T, B = x_ids.shape
    E = emb_table.shape[1]
    H = w_hh.shape[0]
    C = w_fc.shape[1]

    B_pad = _round_up(B, 8)            # sublane tile
    H_pad = _round_up(H, 128)          # each gate gets its own 128-lane slab
    C_pad = _round_up(C, 128)          # lane-dense emission slab
    # NOTE: at realistic T*B the C=8 -> 128 padding inflates emission writeback 16x;
    # flip classes onto the sublane axis (or accept a masked store) in that regime.

    if b_block is None:
        b_block = B_pad                # single block at toy size; pass a smaller multiple
                                       # of 8 to shard large batches across v7x's 2 cores
    assert B_pad % b_block == 0 and b_block % 8 == 0

    # Embedding lookup (+ identity eval-mode dropout); pad batch to the sublane tile.
    # TODO(synk): for non-toy vocab/seq, gather embedding rows inside the kernel via
    # PrefetchScalarGridSpec instead of materializing x_emb in HBM.
    x_emb = jnp.take(emb_table, x_ids, axis=0)                         # (T, B, E)
    x3d = jnp.zeros((T, B_pad, E), mxu_dtype).at[:, :B, :].set(
        x_emb.astype(mxu_dtype))

    # Lane-slab weight layout: gate g occupies lanes [g*H_pad, g*H_pad + H).
    w_ih_p = jnp.zeros((E, 3 * H_pad), mxu_dtype)
    w_hh_p = jnp.zeros((H_pad, 3 * H_pad), mxu_dtype)
    for g in range(3):
        w_ih_p = w_ih_p.at[:, g * H_pad:g * H_pad + H].set(
            w_ih[:, g * H:(g + 1) * H].astype(mxu_dtype))
        w_hh_p = w_hh_p.at[:H, g * H_pad:g * H_pad + H].set(
            w_hh[:, g * H:(g + 1) * H].astype(mxu_dtype))

    # Fold b_hh_r / b_hh_z into the hoisted bias; b_hh_n stays separate (it must remain
    # inside the r * (...) term of the n gate).
    b_ih_g = [b_ih[0, g * H:(g + 1) * H] for g in range(3)]
    b_hh_g = [b_hh[0, g * H:(g + 1) * H] for g in range(3)]
    bih_comb = jnp.zeros((1, 3 * H_pad), jnp.float32)
    bih_comb = bih_comb.at[0, 0 * H_pad:0 * H_pad + H].set(b_ih_g[0] + b_hh_g[0])
    bih_comb = bih_comb.at[0, 1 * H_pad:1 * H_pad + H].set(b_ih_g[1] + b_hh_g[1])
    bih_comb = bih_comb.at[0, 2 * H_pad:2 * H_pad + H].set(b_ih_g[2])
    bhh_n = jnp.zeros((1, H_pad), jnp.float32).at[0, :H].set(b_hh_g[2])

    w_fc_p = jnp.zeros((H_pad, C_pad), mxu_dtype).at[:H, :C].set(w_fc.astype(mxu_dtype))
    b_fc_p = jnp.zeros((1, C_pad), jnp.float32).at[0, :C].set(b_fc[0])

    nb = B_pad // b_block
    const = lambda i: (0, 0)           # weights: same block every grid step (no re-DMA)

    emit_pad = pl.pallas_call(
        gru_fc_kernel,
        out_shape=jax.ShapeDtypeStruct((T, B_pad, C_pad), jnp.float32),
        grid=(nb,),
        in_specs=[
            pl.BlockSpec((T, b_block, E), lambda i: (0, i, 0)),
            pl.BlockSpec((E, 3 * H_pad), const),
            pl.BlockSpec((H_pad, 3 * H_pad), const),
            pl.BlockSpec((1, 3 * H_pad), const),
            pl.BlockSpec((1, H_pad), const),
            pl.BlockSpec((H_pad, C_pad), const),
            pl.BlockSpec((1, C_pad), const),
        ],
        out_specs=pl.BlockSpec((T, b_block, C_pad), lambda i: (0, i, 0)),
        scratch_shapes=[
            pltpu.VMEM((T, b_block, 3 * H_pad), jnp.float32),   # hoisted input projection
            pltpu.VMEM((T, b_block, H_pad), mxu_dtype),         # hidden states
        ],
        compiler_params=pltpu.CompilerParams(
            dimension_semantics=("parallel",),    # batch blocks -> v7x TensorCores
            vmem_limit_bytes=32 * 1024 * 1024,    # explicit; raises v5e's 16 MiB default
        ),
        # TODO(synk): at large T*B, chunk the input projection / FC over T with
        # pltpu.emit_pipeline keeping only the h carry resident (v7x has 64 MiB VMEM).
    )(x3d, w_ih_p, w_hh_p, bih_comb, bhh_n, w_fc_p, b_fc_p)

    return emit_pad[:, :B, :C]


# ------------------------- pure-JAX reference --------------------------------
def rnn_crf_forward_ref(x_ids, params):
    w_ih, w_hh = params["w_ih"], params["w_hh"]
    b_ih, b_hh = params["b_ih"][0], params["b_hh"][0]
    w_fc, b_fc = params["w_fc"], params["b_fc"][0]
    H = w_hh.shape[0]

    x_emb = jnp.take(params["emb"], x_ids, axis=0)            # (T, B, E)
    B = x_emb.shape[1]

    def step(h, x_t):
        gi = x_t @ w_ih + b_ih
        gh = h @ w_hh + b_hh
        i_r, i_z, i_n = gi[:, :H], gi[:, H:2 * H], gi[:, 2 * H:]
        h_r, h_z, h_n = gh[:, :H], gh[:, H:2 * H], gh[:, 2 * H:]
        r = jax.nn.sigmoid(i_r + h_r)
        z = jax.nn.sigmoid(i_z + h_z)
        n = jnp.tanh(i_n + r * h_n)
        h_new = (1.0 - z) * n + z * h
        return h_new, h_new

    h0 = jnp.zeros((B, H), jnp.float32)
    _, hs = lax.scan(step, h0, x_emb)                         # (T, B, H)
    return hs @ w_fc + b_fc


# ------------------------------ param init -----------------------------------
def init_params(key, vocab_size, nemb, nhid, nclass):
    ks = jax.random.split(key, 8)
    params = {
        "emb":  jax.random.normal(ks[0], (vocab_size, nemb), jnp.float32) * 0.1,
        # PyTorch stores weight_ih_l0 as (3H, E); we keep the transposed (E, 3H) layout.
        "w_ih": jax.random.normal(ks[1], (nemb, 3 * nhid), jnp.float32) * 0.1,
        "w_hh": jax.random.normal(ks[2], (nhid, 3 * nhid), jnp.float32) * 0.1,
        "b_ih": jax.random.normal(ks[3], (1, 3 * nhid), jnp.float32) * 0.1,
        "b_hh": jax.random.normal(ks[4], (1, 3 * nhid), jnp.float32) * 0.1,
        "w_fc": jax.random.normal(ks[5], (nhid, nclass), jnp.float32) * 0.1,
        "b_fc": jax.random.normal(ks[6], (1, nclass), jnp.float32) * 0.1,
    }
    # CRF transition matrix (built for completeness; CRF.forward is a stub upstream).
    sot, eot = 0, nclass - 1
    trans = jax.random.uniform(ks[7], (nclass, nclass), jnp.float32)
    trans = trans.at[:, sot].set(-jnp.inf).at[eot, :].set(-jnp.inf)
    params["crf_trans"] = trans
    # TODO(synk): CRF.forward / norm_factor rely on a stub log_sum_exp upstream, so there
    # is no CRF forward semantics to translate.
    return params


# --------------------------------- main ---------------------------------------
if __name__ == "__main__":
    vocab_size, nemb, nhid, nclass = 50, 32, 32, 8
    T, B = 8, 4

    key = jax.random.PRNGKey(0)
    kp, kx = jax.random.split(key)
    params = init_params(kp, vocab_size, nemb, nhid, nclass)
    x_ids = jax.random.randint(kx, (T, B), 0, vocab_size, dtype=jnp.int32)

    emissions = jax.block_until_ready(rnn_crf_forward_pallas(x_ids, params))
    ref = jax.block_until_ready(rnn_crf_forward_ref(x_ids, params))

    assert emissions.shape == (T, B, nclass)
    # Kernel uses bf16 MXU operands (f32 accumulation / gate math) -> loosened tolerance
    # vs. the all-f32 reference.
    assert jnp.allclose(emissions, ref, atol=2e-2, rtol=2e-2), "mismatch vs reference"

    print("KERNEL_OK")
</pallas_src>

<mosaic_0001>
module attributes {stable_mosaic.version = 11 : i64} {
  func.func @gru_fc_kernel(%arg0: i32, %arg1: memref<8x8x32xbf16, #tpu.memory_space<vmem>>, %arg2: memref<32x384xbf16, #tpu.memory_space<vmem>>, %arg3: memref<128x384xbf16, #tpu.memory_space<vmem>>, %arg4: memref<1x384xf32, #tpu.memory_space<vmem>>, %arg5: memref<1x128xf32, #tpu.memory_space<vmem>>, %arg6: memref<128x128xbf16, #tpu.memory_space<vmem>>, %arg7: memref<1x128xf32, #tpu.memory_space<vmem>>, %arg8: memref<8x8x128xf32, #tpu.memory_space<vmem>>, %arg9: memref<8x8x384xf32, #tpu.memory_space<vmem>>, %arg10: memref<8x8x128xbf16, #tpu.memory_space<vmem>>) attributes {dimension_semantics = [#tpu.dimension_semantics<parallel>], iteration_bounds = array<i64: 1>, scalar_prefetch = 0 : i64, scratch_operands = 2 : i64, tpu.core_type = #tpu.core_type<tc>, window_params = [{transform_indices = @transform_0, window_bounds = array<i64: 8, 8, 32>}, {pipeline_mode = #tpu.pipeline_mode<synchronous>, transform_indices = @transform_1, window_bounds = array<i64: 32, 384>}, {pipeline_mode = #tpu.pipeline_mode<synchronous>, transform_indices = @transform_2, window_bounds = array<i64: 128, 384>}, {pipeline_mode = #tpu.pipeline_mode<synchronous>, transform_indices = @transform_3, window_bounds = array<i64: 1, 384>}, {pipeline_mode = #tpu.pipeline_mode<synchronous>, transform_indices = @transform_4, window_bounds = array<i64: 1, 128>}, {pipeline_mode = #tpu.pipeline_mode<synchronous>, transform_indices = @transform_5, window_bounds = array<i64: 128, 128>}, {pipeline_mode = #tpu.pipeline_mode<synchronous>, transform_indices = @transform_6, window_bounds = array<i64: 1, 128>}, {transform_indices = @transform_7, window_bounds = array<i64: 8, 8, 128>}]} {
    %c0 = arith.constant 0 : index
    %c0_0 = arith.constant 0 : index
    %c0_1 = arith.constant 0 : index
    %0 = vector.load %arg1[%c0, %c0_0, %c0_1] : memref<8x8x32xbf16, #tpu.memory_space<vmem>>, vector<8x8x32xbf16>
    %1 = vector.shape_cast %0 : vector<8x8x32xbf16> to vector<64x32xbf16>
    %c0_2 = arith.constant 0 : index
    %c0_3 = arith.constant 0 : index
    %2 = vector.load %arg2[%c0_2, %c0_3] : memref<32x384xbf16, #tpu.memory_space<vmem>>, vector<32x384xbf16>
    %cst = arith.constant dense<0.000000e+00> : vector<64x384xf32>
    %3 = tpu.matmul %1, %2, %cst {dimension_numbers = #tpu.dot_dimension_numbers<[1], [0], [0], [1], [0, 0, 1, 1], [], []>} : vector<64x32xbf16>, vector<32x384xbf16>, vector<64x384xf32> -> vector<64x384xf32>
    %c0_4 = arith.constant 0 : index
    %c0_5 = arith.constant 0 : index
    %4 = vector.load %arg4[%c0_4, %c0_5] : memref<1x384xf32, #tpu.memory_space<vmem>>, vector<1x384xf32>
    %5 = vector.broadcast %4 : vector<1x384xf32> to vector<64x384xf32>
    %6 = arith.addf %3, %5 : vector<64x384xf32>
    %7 = vector.shape_cast %6 : vector<64x384xf32> to vector<8x8x384xf32>
    %c0_6 = arith.constant 0 : index
    %c0_7 = arith.constant 0 : index
    %c0_8 = arith.constant 0 : index
    %8 = vector.load %arg9[%c0_6, %c0_7, %c0_8] : memref<8x8x384xf32, #tpu.memory_space<vmem>>, vector<8x8x384xf32>
    tpu.vector_store %arg9[%c0_6, %c0_7, %c0_8], %7 {strides = array<i32>} : memref<8x8x384xf32, #tpu.memory_space<vmem>>, vector<8x8x384xf32>,
    %c0_9 = arith.constant 0 : index
    %c0_10 = arith.constant 0 : index
    %9 = vector.load %arg3[%c0_9, %c0_10] : memref<128x384xbf16, #tpu.memory_space<vmem>>, vector<128x384xbf16>
    %c0_11 = arith.constant 0 : index
    %c0_12 = arith.constant 0 : index
    %10 = vector.load %arg5[%c0_11, %c0_12] : memref<1x128xf32, #tpu.memory_space<vmem>>, vector<1x128xf32>
    %11 = vector.shape_cast %10 : vector<1x128xf32> to vector<1x128xf32>
    %12 = vector.broadcast %11 : vector<1x128xf32> to vector<8x128xf32>
    %cst_13 = arith.constant 0.000000e+00 : f32
    %13 = vector.broadcast %cst_13 : f32 to vector<8x128xf32>
    %c0_i32 = arith.constant 0 : i32
    %14 = arith.index_cast %c0_i32 : i32 to index
    %c0_14 = arith.constant 0 : index
    %c0_15 = arith.constant 0 : index
    %15 = vector.load %arg9[%14, %c0_14, %c0_15] : memref<8x8x384xf32, #tpu.memory_space<vmem>>, vector<1x8x384xf32>
    %16 = vector.shape_cast %15 : vector<1x8x384xf32> to vector<8x384xf32>
    %17 = arith.truncf %13 : vector<8x128xf32> to vector<8x128xbf16>
    %cst_16 = arith.constant dense<0.000000e+00> : vector<8x384xf32>
    %18 = tpu.matmul %17, %9, %cst_16 {dimension_numbers = #tpu.dot_dimension_numbers<[1], [0], [0], [1], [0, 0, 1, 1], [], []>} : vector<8x128xbf16>, vector<128x384xbf16>, vector<8x384xf32> -> vector<8x384xf32>
    %19 = vector.extract_strided_slice %16 {offsets = [0, 0], sizes = [8, 128], strides = [1, 1]} : vector<8x384xf32> to vector<8x128xf32>
    %20 = vector.extract_strided_slice %16 {offsets = [0, 128], sizes = [8, 128], strides = [1, 1]} : vector<8x384xf32> to vector<8x128xf32>
    %21 = vector.extract_strided_slice %16 {offsets = [0, 256], sizes = [8, 128], strides = [1, 1]} : vector<8x384xf32> to vector<8x128xf32>
    %22 = vector.extract_strided_slice %18 {offsets = [0, 0], sizes = [8, 128], strides = [1, 1]} : vector<8x384xf32> to vector<8x128xf32>
    %23 = vector.extract_strided_slice %18 {offsets = [0, 128], sizes = [8, 128], strides = [1, 1]} : vector<8x384xf32> to vector<8x128xf32>
    %24 = vector.extract_strided_slice %18 {offsets = [0, 256], sizes = [8, 128], strides = [1, 1]} : vector<8x384xf32> to vector<8x128xf32>
    %25 = arith.addf %19, %22 : vector<8x128xf32>
    %26 = arith.negf %25 : vector<8x128xf32>
    %27 = math.exp %26 : vector<8x128xf32>
    %cst_17 = arith.constant 1.000000e+00 : f32
    %28 = vector.broadcast %cst_17 : f32 to vector<8x128xf32>
    %29 = arith.addf %28, %27 : vector<8x128xf32>
    %30 = arith.divf %28, %29 : vector<8x128xf32>
    %31 = arith.addf %20, %23 : vector<8x128xf32>
    %32 = arith.negf %31 : vector<8x128xf32>
    %33 = math.exp %32 : vector<8x128xf32>
    %cst_18 = arith.constant 1.000000e+00 : f32
    %34 = vector.broadcast %cst_18 : f32 to vector<8x128xf32>
    %35 = arith.addf %34, %33 : vector<8x128xf32>
    %36 = arith.divf %34, %35 : vector<8x128xf32>
    %37 = arith.addf %24, %12 : vector<8x128xf32>
    %38 = arith.mulf %30, %37 : vector<8x128xf32>
    %39 = arith.addf %21, %38 : vector<8x128xf32>
    %40 = math.tanh %39 : vector<8x128xf32>
    %cst_19 = arith.constant 1.000000e+00 : f32
    %41 = vector.broadcast %cst_19 : f32 to vector<8x128xf32>
    %42 = arith.subf %41, %36 : vector<8x128xf32>
    %43 = arith.mulf %42, %40 : vector<8x128xf32>
    %44 = arith.mulf %36, %13 : vector<8x128xf32>
    %45 = arith.addf %43, %44 : vector<8x128xf32>
    %46 = arith.truncf %45 : vector<8x128xf32> to vector<8x128xbf16>
    %47 = arith.index_cast %c0_i32 : i32 to index
    %c0_20 = arith.constant 0 : index
    %c0_21 = arith.constant 0 : index
    %48 = vector.load %arg10[%47, %c0_20, %c0_21] : memref<8x8x128xbf16, #tpu.memory_space<vmem>>, vector<1x8x128xbf16>
    %49 = vector.shape_cast %48 : vector<1x8x128xbf16> to vector<8x128xbf16>
    %50 = vector.shape_cast %46 : vector<8x128xbf16> to vector<1x8x128xbf16>
    tpu.vector_store %arg10[%47, %c0_20, %c0_21], %50 {strides = array<i32>} : memref<8x8x128xbf16, #tpu.memory_space<vmem>>, vector<1x8x128xbf16>,
    %c1_i32 = arith.constant 1 : i32
    %51 = arith.index_cast %c1_i32 : i32 to index
    %c0_22 = arith.constant 0 : index
    %c0_23 = arith.constant 0 : index
    %52 = vector.load %arg9[%51, %c0_22, %c0_23] : memref<8x8x384xf32, #tpu.memory_space<vmem>>, vector<1x8x384xf32>
    %53 = vector.shape_cast %52 : vector<1x8x384xf32> to vector<8x384xf32>
    %54 = arith.truncf %45 : vector<8x128xf32> to vector<8x128xbf16>
    %cst_24 = arith.constant dense<0.000000e+00> : vector<8x384xf32>
    %55 = tpu.matmul %54, %9, %cst_24 {dimension_numbers = #tpu.dot_dimension_numbers<[1], [0], [0], [1], [0, 0, 1, 1], [], []>} : vector<8x128xbf16>, vector<128x384xbf16>, vector<8x384xf32> -> vector<8x384xf32>
    %56 = vector.extract_strided_slice %53 {offsets = [0, 0], sizes = [8, 128], strides = [1, 1]} : vector<8x384xf32> to vector<8x128xf32>
    %57 = vector.extract_strided_slice %53 {offsets = [0, 128], sizes = [8, 128], strides = [1, 1]} : vector<8x384xf32> to vector<8x128xf32>
    %58 = vector.extract_strided_slice %53 {offsets = [0, 256], sizes = [8, 128], strides = [1, 1]} : vector<8x384xf32> to vector<8x128xf32>
    %59 = vector.extract_strided_slice %55 {offsets = [0, 0], sizes = [8, 128], strides = [1, 1]} : vector<8x384xf32> to vector<8x128xf32>
    %60 = vector.extract_strided_slice %55 {offsets = [0, 128], sizes = [8, 128], strides = [1, 1]} : vector<8x384xf32> to vector<8x128xf32>
    %61 = vector.extract_strided_slice %55 {offsets = [0, 256], sizes = [8, 128], strides = [1, 1]} : vector<8x384xf32> to vector<8x128xf32>
    %62 = arith.addf %56, %59 : vector<8x128xf32>
    %63 = arith.negf %62 : vector<8x128xf32>
    %64 = math.exp %63 : vector<8x128xf32>
    %cst_25 = arith.constant 1.000000e+00 : f32
    %65 = vector.broadcast %cst_25 : f32 to vector<8x128xf32>
    %66 = arith.addf %65, %64 : vector<8x128xf32>
    %67 = arith.divf %65, %66 : vector<8x128xf32>
    %68 = arith.addf %57, %60 : vector<8x128xf32>
    %69 = arith.negf %68 : vector<8x128xf32>
    %70 = math.exp %69 : vector<8x128xf32>
    %cst_26 = arith.constant 1.000000e+00 : f32
    %71 = vector.broadcast %cst_26 : f32 to vector<8x128xf32>
    %72 = arith.addf %71, %70 : vector<8x128xf32>
    %73 = arith.divf %71, %72 : vector<8x128xf32>
    %74 = arith.addf %61, %12 : vector<8x128xf32>
    %75 = arith.mulf %67, %74 : vector<8x128xf32>
    %76 = arith.addf %58, %75 : vector<8x128xf32>
    %77 = math.tanh %76 : vector<8x128xf32>
    %cst_27 = arith.constant 1.000000e+00 : f32
    %78 = vector.broadcast %cst_27 : f32 to vector<8x128xf32>
    %79 = arith.subf %78, %73 : vector<8x128xf32>
    %80 = arith.mulf %79, %77 : vector<8x128xf32>
    %81 = arith.mulf %73, %45 : vector<8x128xf32>
    %82 = arith.addf %80, %81 : vector<8x128xf32>
    %83 = arith.truncf %82 : vector<8x128xf32> to vector<8x128xbf16>
    %84 = arith.index_cast %c1_i32 : i32 to index
    %c0_28 = arith.constant 0 : index
    %c0_29 = arith.constant 0 : index
    %85 = vector.load %arg10[%84, %c0_28, %c0_29] : memref<8x8x128xbf16, #tpu.memory_space<vmem>>, vector<1x8x128xbf16>
    %86 = vector.shape_cast %85 : vector<1x8x128xbf16> to vector<8x128xbf16>
    %87 = vector.shape_cast %83 : vector<8x128xbf16> to vector<1x8x128xbf16>
    tpu.vector_store %arg10[%84, %c0_28, %c0_29], %87 {strides = array<i32>} : memref<8x8x128xbf16, #tpu.memory_space<vmem>>, vector<1x8x128xbf16>,
    %c2_i32 = arith.constant 2 : i32
    %88 = arith.index_cast %c2_i32 : i32 to index
    %c0_30 = arith.constant 0 : index
    %c0_31 = arith.constant 0 : index
    %89 = vector.load %arg9[%88, %c0_30, %c0_31] : memref<8x8x384xf32, #tpu.memory_space<vmem>>, vector<1x8x384xf32>
    %90 = vector.shape_cast %89 : vector<1x8x384xf32> to vector<8x384xf32>
    %91 = arith.truncf %82 : vector<8x128xf32> to vector<8x128xbf16>
    %cst_32 = arith.constant dense<0.000000e+00> : vector<8x384xf32>
    %92 = tpu.matmul %91, %9, %cst_32 {dimension_numbers = #tpu.dot_dimension_numbers<[1], [0], [0], [1], [0, 0, 1, 1], [], []>} : vector<8x128xbf16>, vector<128x384xbf16>, vector<8x384xf32> -> vector<8x384xf32>
    %93 = vector.extract_strided_slice %90 {offsets = [0, 0], sizes = [8, 128], strides = [1, 1]} : vector<8x384xf32> to vector<8x128xf32>
    %94 = vector.extract_strided_slice %90 {offsets = [0, 128], sizes = [8, 128], strides = [1, 1]} : vector<8x384xf32> to vector<8x128xf32>
    %95 = vector.extract_strided_slice %90 {offsets = [0, 256], sizes = [8, 128], strides = [1, 1]} : vector<8x384xf32> to vector<8x128xf32>
    %96 = vector.extract_strided_slice %92 {offsets = [0, 0], sizes = [8, 128], strides = [1, 1]} : vector<8x384xf32> to vector<8x128xf32>
    %97 = vector.extract_strided_slice %92 {offsets = [0, 128], sizes = [8, 128], strides = [1, 1]} : vector<8x384xf32> to vector<8x128xf32>
    %98 = vector.extract_strided_slice %92 {offsets = [0, 256], sizes = [8, 128], strides = [1, 1]} : vector<8x384xf32> to vector<8x128xf32>
    %99 = arith.addf %93, %96 : vector<8x128xf32>
    %100 = arith.negf %99 : vector<8x128xf32>
    %101 = math.exp %100 : vector<8x128xf32>
    %cst_33 = arith.constant 1.000000e+00 : f32
    %102 = vector.broadcast %cst_33 : f32 to vector<8x128xf32>
    %103 = arith.addf %102, %101 : vector<8x128xf32>
    %104 = arith.divf %102, %103 : vector<8x128xf32>
    %105 = arith.addf %94, %97 : vector<8x128xf32>
    %106 = arith.negf %105 : vector<8x128xf32>
    %107 = math.exp %106 : vector<8x128xf32>
    %cst_34 = arith.constant 1.000000e+00 : f32
    %108 = vector.broadcast %cst_34 : f32 to vector<8x128xf32>
    %109 = arith.addf %108, %107 : vector<8x128xf32>
    %110 = arith.divf %108, %109 : vector<8x128xf32>
    %111 = arith.addf %98, %12 : vector<8x128xf32>
    %112 = arith.mulf %104, %111 : vector<8x128xf32>
    %113 = arith.addf %95, %112 : vector<8x128xf32>
    %114 = math.tanh %113 : vector<8x128xf32>
    %cst_35 = arith.constant 1.000000e+00 : f32
    %115 = vector.broadcast %cst_35 : f32 to vector<8x128xf32>
    %116 = arith.subf %115, %110 : vector<8x128xf32>
    %117 = arith.mulf %116, %114 : vector<8x128xf32>
    %118 = arith.mulf %110, %82 : vector<8x128xf32>
    %119 = arith.addf %117, %118 : vector<8x128xf32>
    %120 = arith.truncf %119 : vector<8x128xf32> to vector<8x128xbf16>
    %121 = arith.index_cast %c2_i32 : i32 to index
    %c0_36 = arith.constant 0 : index
    %c0_37 = arith.constant 0 : index
    %122 = vector.load %arg10[%121, %c0_36, %c0_37] : memref<8x8x128xbf16, #tpu.memory_space<vmem>>, vector<1x8x128xbf16>
    %123 = vector.shape_cast %122 : vector<1x8x128xbf16> to vector<8x128xbf16>
    %124 = vector.shape_cast %120 : vector<8x128xbf16> to vector<1x8x128xbf16>
    tpu.vector_store %arg10[%121, %c0_36, %c0_37], %124 {strides = array<i32>} : memref<8x8x128xbf16, #tpu.memory_space<vmem>>, vector<1x8x128xbf16>,
    %c3_i32 = arith.constant 3 : i32
    %125 = arith.index_cast %c3_i32 : i32 to index
    %c0_38 = arith.constant 0 : index
    %c0_39 = arith.constant 0 : index
    %126 = vector.load %arg9[%125, %c0_38, %c0_39] : memref<8x8x384xf32, #tpu.memory_space<vmem>>, vector<1x8x384xf32>
    %127 = vector.shape_cast %126 : vector<1x8x384xf32> to vector<8x384xf32>
    %128 = arith.truncf %119 : vector<8x128xf32> to vector<8x128xbf16>
    %cst_40 = arith.constant dense<0.000000e+00> : vector<8x384xf32>
    %129 = tpu.matmul %128, %9, %cst_40 {dimension_numbers = #tpu.dot_dimension_numbers<[1], [0], [0], [1], [0, 0, 1, 1], [], []>} : vector<8x128xbf16>, vector<128x384xbf16>, vector<8x384xf32> -> vector<8x384xf32>
    %130 = vector.extract_strided_slice %127 {offsets = [0, 0], sizes = [8, 128], strides = [1, 1]} : vector<8x384xf32> to vector<8x128xf32>
    %131 = vector.extract_strided_slice %127 {offsets = [0, 128], sizes = [8, 128], strides = [1, 1]} : vector<8x384xf32> to vector<8x128xf32>
    %132 = vector.extract_strided_slice %127 {offsets = [0, 256], sizes = [8, 128], strides = [1, 1]} : vector<8x384xf32> to vector<8x128xf32>
    %133 = vector.extract_strided_slice %129 {offsets = [0, 0], sizes = [8, 128], strides = [1, 1]} : vector<8x384xf32> to vector<8x128xf32>
    %134 = vector.extract_strided_slice %129 {offsets = [0, 128], sizes = [8, 128], strides = [1, 1]} : vector<8x384xf32> to vector<8x128xf32>
    %135 = vector.extract_strided_slice %129 {offsets = [0, 256], sizes = [8, 128], strides = [1, 1]} : vector<8x384xf32> to vector<8x128xf32>
    %136 = arith.addf %130, %133 : vector<8x128xf32>
    %137 = arith.negf %136 : vector<8x128xf32>
    %138 = math.exp %137 : vector<8x128xf32>
    %cst_41 = arith.constant 1.000000e+00 : f32
    %139 = vector.broadcast %cst_41 : f32 to vector<8x128xf32>
    %140 = arith.addf %139, %138 : vector<8x128xf32>
    %141 = arith.divf %139, %140 : vector<8x128xf32>
    %142 = arith.addf %131, %134 : vector<8x128xf32>
    %143 = arith.negf %142 : vector<8x128xf32>
    %144 = math.exp %143 : vector<8x128xf32>
    %cst_42 = arith.constant 1.000000e+00 : f32
    %145 = vector.broadcast %cst_42 : f32 to vector<8x128xf32>
    %146 = arith.addf %145, %144 : vector<8x128xf32>
    %147 = arith.divf %145, %146 : vector<8x128xf32>
    %148 = arith.addf %135, %12 : vector<8x128xf32>
    %149 = arith.mulf %141, %148 : vector<8x128xf32>
    %150 = arith.addf %132, %149 : vector<8x128xf32>
    %151 = math.tanh %150 : vector<8x128xf32>
    %cst_43 = arith.constant 1.000000e+00 : f32
    %152 = vector.broadcast %cst_43 : f32 to vector<8x128xf32>
    %153 = arith.subf %152, %147 : vector<8x128xf32>
    %154 = arith.mulf %153, %151 : vector<8x128xf32>
    %155 = arith.mulf %147, %119 : vector<8x128xf32>
    %156 = arith.addf %154, %155 : vector<8x128xf32>
    %157 = arith.truncf %156 : vector<8x128xf32> to vector<8x128xbf16>
    %158 = arith.index_cast %c3_i32 : i32 to index
    %c0_44 = arith.constant 0 : index
    %c0_45 = arith.constant 0 : index
    %159 = vector.load %arg10[%158, %c0_44, %c0_45] : memref<8x8x128xbf16, #tpu.memory_space<vmem>>, vector<1x8x128xbf16>
    %160 = vector.shape_cast %159 : vector<1x8x128xbf16> to vector<8x128xbf16>
    %161 = vector.shape_cast %157 : vector<8x128xbf16> to vector<1x8x128xbf16>
    tpu.vector_store %arg10[%158, %c0_44, %c0_45], %161 {strides = array<i32>} : memref<8x8x128xbf16, #tpu.memory_space<vmem>>, vector<1x8x128xbf16>,
    %c4_i32 = arith.constant 4 : i32
    %162 = arith.index_cast %c4_i32 : i32 to index
    %c0_46 = arith.constant 0 : index
    %c0_47 = arith.constant 0 : index
    %163 = vector.load %arg9[%162, %c0_46, %c0_47] : memref<8x8x384xf32, #tpu.memory_space<vmem>>, vector<1x8x384xf32>
    %164 = vector.shape_cast %163 : vector<1x8x384xf32> to vector<8x384xf32>
    %165 = arith.truncf %156 : vector<8x128xf32> to vector<8x128xbf16>
    %cst_48 = arith.constant dense<0.000000e+00> : vector<8x384xf32>
    %166 = tpu.matmul %165, %9, %cst_48 {dimension_numbers = #tpu.dot_dimension_numbers<[1], [0], [0], [1], [0, 0, 1, 1], [], []>} : vector<8x128xbf16>, vector<128x384xbf16>, vector<8x384xf32> -> vector<8x384xf32>
    %167 = vector.extract_strided_slice %164 {offsets = [0, 0], sizes = [8, 128], strides = [1, 1]} : vector<8x384xf32> to vector<8x128xf32>
    %168 = vector.extract_strided_slice %164 {offsets = [0, 128], sizes = [8, 128], strides = [1, 1]} : vector<8x384xf32> to vector<8x128xf32>
    %169 = vector.extract_strided_slice %164 {offsets = [0, 256], sizes = [8, 128], strides = [1, 1]} : vector<8x384xf32> to vector<8x128xf32>
    %170 = vector.extract_strided_slice %166 {offsets = [0, 0], sizes = [8, 128], strides = [1, 1]} : vector<8x384xf32> to vector<8x128xf32>
    %171 = vector.extract_strided_slice %166 {offsets = [0, 128], sizes = [8, 128], strides = [1, 1]} : vector<8x384xf32> to vector<8x128xf32>
    %172 = vector.extract_strided_slice %166 {offsets = [0, 256], sizes = [8, 128], strides = [1, 1]} : vector<8x384xf32> to vector<8x128xf32>
    %173 = arith.addf %167, %170 : vector<8x128xf32>
    %174 = arith.negf %173 : vector<8x128xf32>
    %175 = math.exp %174 : vector<8x128xf32>
    %cst_49 = arith.constant 1.000000e+00 : f32
    %176 = vector.broadcast %cst_49 : f32 to vector<8x128xf32>
    %177 = arith.addf %176, %175 : vector<8x128xf32>
    %178 = arith.divf %176, %177 : vector<8x128xf32>
    %179 = arith.addf %168, %171 : vector<8x128xf32>
    %180 = arith.negf %179 : vector<8x128xf32>
    %181 = math.exp %180 : vector<8x128xf32>
    %cst_50 = arith.constant 1.000000e+00 : f32
    %182 = vector.broadcast %cst_50 : f32 to vector<8x128xf32>
    %183 = arith.addf %182, %181 : vector<8x128xf32>
    %184 = arith.divf %182, %183 : vector<8x128xf32>
    %185 = arith.addf %172, %12 : vector<8x128xf32>
    %186 = arith.mulf %178, %185 : vector<8x128xf32>
    %187 = arith.addf %169, %186 : vector<8x128xf32>
    %188 = math.tanh %187 : vector<8x128xf32>
    %cst_51 = arith.constant 1.000000e+00 : f32
    %189 = vector.broadcast %cst_51 : f32 to vector<8x128xf32>
    %190 = arith.subf %189, %184 : vector<8x128xf32>
    %191 = arith.mulf %190, %188 : vector<8x128xf32>
    %192 = arith.mulf %184, %156 : vector<8x128xf32>
    %193 = arith.addf %191, %192 : vector<8x128xf32>
    %194 = arith.truncf %193 : vector<8x128xf32> to vector<8x128xbf16>
    %195 = arith.index_cast %c4_i32 : i32 to index
    %c0_52 = arith.constant 0 : index
    %c0_53 = arith.constant 0 : index
    %196 = vector.load %arg10[%195, %c0_52, %c0_53] : memref<8x8x128xbf16, #tpu.memory_space<vmem>>, vector<1x8x128xbf16>
    %197 = vector.shape_cast %196 : vector<1x8x128xbf16> to vector<8x128xbf16>
    %198 = vector.shape_cast %194 : vector<8x128xbf16> to vector<1x8x128xbf16>
    tpu.vector_store %arg10[%195, %c0_52, %c0_53], %198 {strides = array<i32>} : memref<8x8x128xbf16, #tpu.memory_space<vmem>>, vector<1x8x128xbf16>,
    %c5_i32 = arith.constant 5 : i32
    %199 = arith.index_cast %c5_i32 : i32 to index
    %c0_54 = arith.constant 0 : index
    %c0_55 = arith.constant 0 : index
    %200 = vector.load %arg9[%199, %c0_54, %c0_55] : memref<8x8x384xf32, #tpu.memory_space<vmem>>, vector<1x8x384xf32>
    %201 = vector.shape_cast %200 : vector<1x8x384xf32> to vector<8x384xf32>
    %202 = arith.truncf %193 : vector<8x128xf32> to vector<8x128xbf16>
    %cst_56 = arith.constant dense<0.000000e+00> : vector<8x384xf32>
    %203 = tpu.matmul %202, %9, %cst_56 {dimension_numbers = #tpu.dot_dimension_numbers<[1], [0], [0], [1], [0, 0, 1, 1], [], []>} : vector<8x128xbf16>, vector<128x384xbf16>, vector<8x384xf32> -> vector<8x384xf32>
    %204 = vector.extract_strided_slice %201 {offsets = [0, 0], sizes = [8, 128], strides = [1, 1]} : vector<8x384xf32> to vector<8x128xf32>
    %205 = vector.extract_strided_slice %201 {offsets = [0, 128], sizes = [8, 128], strides = [1, 1]} : vector<8x384xf32> to vector<8x128xf32>
    %206 = vector.extract_strided_slice %201 {offsets = [0, 256], sizes = [8, 128], strides = [1, 1]} : vector<8x384xf32> to vector<8x128xf32>
    %207 = vector.extract_strided_slice %203 {offsets = [0, 0], sizes = [8, 128], strides = [1, 1]} : vector<8x384xf32> to vector<8x128xf32>
    %208 = vector.extract_strided_slice %203 {offsets = [0, 128], sizes = [8, 128], strides = [1, 1]} : vector<8x384xf32> to vector<8x128xf32>
    %209 = vector.extract_strided_slice %203 {offsets = [0, 256], sizes = [8, 128], strides = [1, 1]} : vector<8x384xf32> to vector<8x128xf32>
    %210 = arith.addf %204, %207 : vector<8x128xf32>
    %211 = arith.negf %210 : vector<8x128xf32>
    %212 = math.exp %211 : vector<8x128xf32>
    %cst_57 = arith.constant 1.000000e+00 : f32
    %213 = vector.broadcast %cst_57 : f32 to vector<8x128xf32>
    %214 = arith.addf %213, %212 : vector<8x128xf32>
    %215 = arith.divf %213, %214 : vector<8x128xf32>
    %216 = arith.addf %205, %208 : vector<8x128xf32>
    %217 = arith.negf %216 : vector<8x128xf32>
    %218 = math.exp %217 : vector<8x128xf32>
    %cst_58 = arith.constant 1.000000e+00 : f32
    %219 = vector.broadcast %cst_58 : f32 to vector<8x128xf32>
    %220 = arith.addf %219, %218 : vector<8x128xf32>
    %221 = arith.divf %219, %220 : vector<8x128xf32>
    %222 = arith.addf %209, %12 : vector<8x128xf32>
    %223 = arith.mulf %215, %222 : vector<8x128xf32>
    %224 = arith.addf %206, %223 : vector<8x128xf32>
    %225 = math.tanh %224 : vector<8x128xf32>
    %cst_59 = arith.constant 1.000000e+00 : f32
    %226 = vector.broadcast %cst_59 : f32 to vector<8x128xf32>
    %227 = arith.subf %226, %221 : vector<8x128xf32>
    %228 = arith.mulf %227, %225 : vector<8x128xf32>
    %229 = arith.mulf %221, %193 : vector<8x128xf32>
    %230 = arith.addf %228, %229 : vector<8x128xf32>
    %231 = arith.truncf %230 : vector<8x128xf32> to vector<8x128xbf16>
    %232 = arith.index_cast %c5_i32 : i32 to index
    %c0_60 = arith.constant 0 : index
    %c0_61 = arith.constant 0 : index
    %233 = vector.load %arg10[%232, %c0_60, %c0_61] : memref<8x8x128xbf16, #tpu.memory_space<vmem>>, vector<1x8x128xbf16>
    %234 = vector.shape_cast %233 : vector<1x8x128xbf16> to vector<8x128xbf16>
    %235 = vector.shape_cast %231 : vector<8x128xbf16> to vector<1x8x128xbf16>
    tpu.vector_store %arg10[%232, %c0_60, %c0_61], %235 {strides = array<i32>} : memref<8x8x128xbf16, #tpu.memory_space<vmem>>, vector<1x8x128xbf16>,
    %c6_i32 = arith.constant 6 : i32
    %236 = arith.index_cast %c6_i32 : i32 to index
    %c0_62 = arith.constant 0 : index
    %c0_63 = arith.constant 0 : index
    %237 = vector.load %arg9[%236, %c0_62, %c0_63] : memref<8x8x384xf32, #tpu.memory_space<vmem>>, vector<1x8x384xf32>
    %238 = vector.shape_cast %237 : vector<1x8x384xf32> to vector<8x384xf32>
    %239 = arith.truncf %230 : vector<8x128xf32> to vector<8x128xbf16>
    %cst_64 = arith.constant dense<0.000000e+00> : vector<8x384xf32>
    %240 = tpu.matmul %239, %9, %cst_64 {dimension_numbers = #tpu.dot_dimension_numbers<[1], [0], [0], [1], [0, 0, 1, 1], [], []>} : vector<8x128xbf16>, vector<128x384xbf16>, vector<8x384xf32> -> vector<8x384xf32>
    %241 = vector.extract_strided_slice %238 {offsets = [0, 0], sizes = [8, 128], strides = [1, 1]} : vector<8x384xf32> to vector<8x128xf32>
    %242 = vector.extract_strided_slice %238 {offsets = [0, 128], sizes = [8, 128], strides = [1, 1]} : vector<8x384xf32> to vector<8x128xf32>
    %243 = vector.extract_strided_slice %238 {offsets = [0, 256], sizes = [8, 128], strides = [1, 1]} : vector<8x384xf32> to vector<8x128xf32>
    %244 = vector.extract_strided_slice %240 {offsets = [0, 0], sizes = [8, 128], strides = [1, 1]} : vector<8x384xf32> to vector<8x128xf32>
    %245 = vector.extract_strided_slice %240 {offsets = [0, 128], sizes = [8, 128], strides = [1, 1]} : vector<8x384xf32> to vector<8x128xf32>
    %246 = vector.extract_strided_slice %240 {offsets = [0, 256], sizes = [8, 128], strides = [1, 1]} : vector<8x384xf32> to vector<8x128xf32>
    %247 = arith.addf %241, %244 : vector<8x128xf32>
    %248 = arith.negf %247 : vector<8x128xf32>
    %249 = math.exp %248 : vector<8x128xf32>
    %cst_65 = arith.constant 1.000000e+00 : f32
    %250 = vector.broadcast %cst_65 : f32 to vector<8x128xf32>
    %251 = arith.addf %250, %249 : vector<8x128xf32>
    %252 = arith.divf %250, %251 : vector<8x128xf32>
    %253 = arith.addf %242, %245 : vector<8x128xf32>
    %254 = arith.negf %253 : vector<8x128xf32>
    %255 = math.exp %254 : vector<8x128xf32>
    %cst_66 = arith.constant 1.000000e+00 : f32
    %256 = vector.broadcast %cst_66 : f32 to vector<8x128xf32>
    %257 = arith.addf %256, %255 : vector<8x128xf32>
    %258 = arith.divf %256, %257 : vector<8x128xf32>
    %259 = arith.addf %246, %12 : vector<8x128xf32>
    %260 = arith.mulf %252, %259 : vector<8x128xf32>
    %261 = arith.addf %243, %260 : vector<8x128xf32>
    %262 = math.tanh %261 : vector<8x128xf32>
    %cst_67 = arith.constant 1.000000e+00 : f32
    %263 = vector.broadcast %cst_67 : f32 to vector<8x128xf32>
    %264 = arith.subf %263, %258 : vector<8x128xf32>
    %265 = arith.mulf %264, %262 : vector<8x128xf32>
    %266 = arith.mulf %258, %230 : vector<8x128xf32>
    %267 = arith.addf %265, %266 : vector<8x128xf32>
    %268 = arith.truncf %267 : vector<8x128xf32> to vector<8x128xbf16>
    %269 = arith.index_cast %c6_i32 : i32 to index
    %c0_68 = arith.constant 0 : index
    %c0_69 = arith.constant 0 : index
    %270 = vector.load %arg10[%269, %c0_68, %c0_69] : memref<8x8x128xbf16, #tpu.memory_space<vmem>>, vector<1x8x128xbf16>
    %271 = vector.shape_cast %270 : vector<1x8x128xbf16> to vector<8x128xbf16>
    %272 = vector.shape_cast %268 : vector<8x128xbf16> to vector<1x8x128xbf16>
    tpu.vector_store %arg10[%269, %c0_68, %c0_69], %272 {strides = array<i32>} : memref<8x8x128xbf16, #tpu.memory_space<vmem>>, vector<1x8x128xbf16>,
    %c7_i32 = arith.constant 7 : i32
    %273 = arith.index_cast %c7_i32 : i32 to index
    %c0_70 = arith.constant 0 : index
    %c0_71 = arith.constant 0 : index
    %274 = vector.load %arg9[%273, %c0_70, %c0_71] : memref<8x8x384xf32, #tpu.memory_space<vmem>>, vector<1x8x384xf32>
    %275 = vector.shape_cast %274 : vector<1x8x384xf32> to vector<8x384xf32>
    %276 = arith.truncf %267 : vector<8x128xf32> to vector<8x128xbf16>
    %cst_72 = arith.constant dense<0.000000e+00> : vector<8x384xf32>
    %277 = tpu.matmul %276, %9, %cst_72 {dimension_numbers = #tpu.dot_dimension_numbers<[1], [0], [0], [1], [0, 0, 1, 1], [], []>} : vector<8x128xbf16>, vector<128x384xbf16>, vector<8x384xf32> -> vector<8x384xf32>
    %278 = vector.extract_strided_slice %275 {offsets = [0, 0], sizes = [8, 128], strides = [1, 1]} : vector<8x384xf32> to vector<8x128xf32>
    %279 = vector.extract_strided_slice %275 {offsets = [0, 128], sizes = [8, 128], strides = [1, 1]} : vector<8x384xf32> to vector<8x128xf32>
    %280 = vector.extract_strided_slice %275 {offsets = [0, 256], sizes = [8, 128], strides = [1, 1]} : vector<8x384xf32> to vector<8x128xf32>
    %281 = vector.extract_strided_slice %277 {offsets = [0, 0], sizes = [8, 128], strides = [1, 1]} : vector<8x384xf32> to vector<8x128xf32>
    %282 = vector.extract_strided_slice %277 {offsets = [0, 128], sizes = [8, 128], strides = [1, 1]} : vector<8x384xf32> to vector<8x128xf32>
    %283 = vector.extract_strided_slice %277 {offsets = [0, 256], sizes = [8, 128], strides = [1, 1]} : vector<8x384xf32> to vector<8x128xf32>
    %284 = arith.addf %278, %281 : vector<8x128xf32>
    %285 = arith.negf %284 : vector<8x128xf32>
    %286 = math.exp %285 : vector<8x128xf32>
    %cst_73 = arith.constant 1.000000e+00 : f32
    %287 = vector.broadcast %cst_73 : f32 to vector<8x128xf32>
    %288 = arith.addf %287, %286 : vector<8x128xf32>
    %289 = arith.divf %287, %288 : vector<8x128xf32>
    %290 = arith.addf %279, %282 : vector<8x128xf32>
    %291 = arith.negf %290 : vector<8x128xf32>
    %292 = math.exp %291 : vector<8x128xf32>
    %cst_74 = arith.constant 1.000000e+00 : f32
    %293 = vector.broadcast %cst_74 : f32 to vector<8x128xf32>
    %294 = arith.addf %293, %292 : vector<8x128xf32>
    %295 = arith.divf %293, %294 : vector<8x128xf32>
    %296 = arith.addf %283, %12 : vector<8x128xf32>
    %297 = arith.mulf %289, %296 : vector<8x128xf32>
    %298 = arith.addf %280, %297 : vector<8x128xf32>
    %299 = math.tanh %298 : vector<8x128xf32>
    %cst_75 = arith.constant 1.000000e+00 : f32
    %300 = vector.broadcast %cst_75 : f32 to vector<8x128xf32>
    %301 = arith.subf %300, %295 : vector<8x128xf32>
    %302 = arith.mulf %301, %299 : vector<8x128xf32>
    %303 = arith.mulf %295, %267 : vector<8x128xf32>
    %304 = arith.addf %302, %303 : vector<8x128xf32>
    %305 = arith.truncf %304 : vector<8x128xf32> to vector<8x128xbf16>
    %306 = arith.index_cast %c7_i32 : i32 to index
    %c0_76 = arith.constant 0 : index
    %c0_77 = arith.constant 0 : index
    %307 = vector.load %arg10[%306, %c0_76, %c0_77] : memref<8x8x128xbf16, #tpu.memory_space<vmem>>, vector<1x8x128xbf16>
    %308 = vector.shape_cast %307 : vector<1x8x128xbf16> to vector<8x128xbf16>
    %309 = vector.shape_cast %305 : vector<8x128xbf16> to vector<1x8x128xbf16>
    tpu.vector_store %arg10[%306, %c0_76, %c0_77], %309 {strides = array<i32>} : memref<8x8x128xbf16, #tpu.memory_space<vmem>>, vector<1x8x128xbf16>,
    %c8_i32 = arith.constant 8 : i32
    %c0_78 = arith.constant 0 : index
    %c0_79 = arith.constant 0 : index
    %c0_80 = arith.constant 0 : index
    %310 = vector.load %arg10[%c0_78, %c0_79, %c0_80] : memref<8x8x128xbf16, #tpu.memory_space<vmem>>, vector<8x8x128xbf16>
    %311 = vector.shape_cast %310 : vector<8x8x128xbf16> to vector<64x128xbf16>
    %c0_81 = arith.constant 0 : index
    %c0_82 = arith.constant 0 : index
    %312 = vector.load %arg6[%c0_81, %c0_82] : memref<128x128xbf16, #tpu.memory_space<vmem>>, vector<128x128xbf16>
    %cst_83 = arith.constant dense<0.000000e+00> : vector<64x128xf32>
    %313 = tpu.matmul %311, %312, %cst_83 {dimension_numbers = #tpu.dot_dimension_numbers<[1], [0], [0], [1], [0, 0, 1, 1], [], []>} : vector<64x128xbf16>, vector<128x128xbf16>, vector<64x128xf32> -> vector<64x128xf32>
    %c0_84 = arith.constant 0 : index
    %c0_85 = arith.constant 0 : index
    %314 = vector.load %arg7[%c0_84, %c0_85] : memref<1x128xf32, #tpu.memory_space<vmem>>, vector<1x128xf32>
    %315 = vector.broadcast %314 : vector<1x128xf32> to vector<64x128xf32>
    %316 = arith.addf %313, %315 : vector<64x128xf32>
    %317 = vector.shape_cast %316 : vector<64x128xf32> to vector<8x8x128xf32>
    %c0_86 = arith.constant 0 : index
    %c0_87 = arith.constant 0 : index
    %c0_88 = arith.constant 0 : index
    %318 = vector.load %arg8[%c0_86, %c0_87, %c0_88] : memref<8x8x128xf32, #tpu.memory_space<vmem>>, vector<8x8x128xf32>
    tpu.vector_store %arg8[%c0_86, %c0_87, %c0_88], %317 {strides = array<i32>} : memref<8x8x128xf32, #tpu.memory_space<vmem>>, vector<8x8x128xf32>,
    return
  }
  func.func @transform_0(%arg0: i32) -> (i32, i32, i32) {
    %c0_i32 = arith.constant 0 : i32
    %c0_i32_0 = arith.constant 0 : i32
    %c0_i32_1 = arith.constant 0 : i32
    return %c0_i32, %arg0, %c0_i32_0 : i32, i32, i32
  }
  func.func @transform_1(%arg0: i32) -> (i32, i32) {
    %c0_i32 = arith.constant 0 : i32
    %c0_i32_0 = arith.constant 0 : i32
    %c0_i32_1 = arith.constant 0 : i32
    return %c0_i32, %c0_i32_0 : i32, i32
  }
  func.func @transform_2(%arg0: i32) -> (i32, i32) {
    %c0_i32 = arith.constant 0 : i32
    %c0_i32_0 = arith.constant 0 : i32
    %c0_i32_1 = arith.constant 0 : i32
    return %c0_i32, %c0_i32_0 : i32, i32
  }
  func.func @transform_3(%arg0: i32) -> (i32, i32) {
    %c0_i32 = arith.constant 0 : i32
    %c0_i32_0 = arith.constant 0 : i32
    %c0_i32_1 = arith.constant 0 : i32
    return %c0_i32, %c0_i32_0 : i32, i32
  }
  func.func @transform_4(%arg0: i32) -> (i32, i32) {
    %c0_i32 = arith.constant 0 : i32
    %c0_i32_0 = arith.constant 0 : i32
    %c0_i32_1 = arith.constant 0 : i32
    return %c0_i32, %c0_i32_0 : i32, i32
  }
  func.func @transform_5(%arg0: i32) -> (i32, i32) {
    %c0_i32 = arith.constant 0 : i32
    %c0_i32_0 = arith.constant 0 : i32
    %c0_i32_1 = arith.constant 0 : i32
    return %c0_i32, %c0_i32_0 : i32, i32
  }
  func.func @transform_6(%arg0: i32) -> (i32, i32) {
    %c0_i32 = arith.constant 0 : i32
    %c0_i32_0 = arith.constant 0 : i32
    %c0_i32_1 = arith.constant 0 : i32
    return %c0_i32, %c0_i32_0 : i32, i32
  }
  func.func @transform_7(%arg0: i32) -> (i32, i32, i32) {
    %c0_i32 = arith.constant 0 : i32
    %c0_i32_0 = arith.constant 0 : i32
    %c0_i32_1 = arith.constant 0 : i32
    return %c0_i32, %arg0, %c0_i32_0 : i32, i32, i32
  }
}

</mosaic_0001>

<llo_original>
// kernel: tpu_custom_call.1
$region0: #{tpu_custom_call.1}
  #allocation0 [shape = 'u32[]', space=smem, size = 0x4, offset = 0x4, fixed_abs, tag = 'smem constant byte address 0x4 - core index']
  #allocation1 [shape = 'u32[144,128]{1,0:T(1,128)}', space=vmem, size = 0x12000, scoped, tag = 'internal scratch']
  #allocation2 [shape = 'f32[8,8,384]{2,1,0:T(8,128)}', space=vmem, size = 0x18000, scoped, tag = 'scratch operand']
  #allocation3 [shape = 'bf16[8,8,128]{2,1,0:T(8,128)(2,1)}', space=vmem, size = 0x4000, scoped, tag = 'scratch operand']
  %s0 = inlined_call_operand.hbm [shape: bf16[8,8,32], index: 0, kind: input, shape index: {}]
  %s1 = inlined_call_operand.hbm [shape: bf16[32,384], index: 1, kind: input, shape index: {}]
  %s2 = inlined_call_operand.hbm [shape: bf16[128,384], index: 2, kind: input, shape index: {}]
  %s3 = inlined_call_operand.vmem [shape: f32[1,384], index: 3, kind: input, shape index: {}]
  %s4 = inlined_call_operand.vmem [shape: f32[1,128], index: 4, kind: input, shape index: {}]
  %s5 = inlined_call_operand.hbm [shape: bf16[128,128], index: 5, kind: input, shape index: {}]
  %s6 = inlined_call_operand.vmem [shape: f32[1,128], index: 6, kind: input, shape index: {}]
  %s7 = inlined_call_operand.hbm [shape: f32[8,8,128], index: 7, kind: output, shape index: {}]
  %s8 = sld [smem:[#allocation0]]
  $region54: #{tpu_custom_call.1} parent=0
    _
  %s10 = ssub.s32 1, %s8
  %s11 = scalar_select 0, %s10, %s8
  $region1: #{tpu_custom_call.1} parent=0
    #allocation4 [shape = 'u8[16384]{0}', space=vmem, size = 0x4000, scoped, tag = 'input window, operand 0, single buffered']
    #allocation5 [shape = 's32[1]{0}', space=sflag, size = 0x4, scoped, tag = 'scoped memory for tpu_custom_call.1']
    #allocation6 [shape = 's32[1]{0}', space=sflag, size = 0x4, scoped, tag = 'scoped memory for tpu_custom_call.1']
    #allocation7 [shape = 'u8[24576]{0}', space=vmem, size = 0x6000, scoped, tag = 'input window, operand 1, single buffered']
    #allocation8 [shape = 's32[1]{0}', space=sflag, size = 0x4, scoped, tag = 'scoped memory for tpu_custom_call.1']
    #allocation9 [shape = 'u8[98304]{0}', space=vmem, size = 0x18000, scoped, tag = 'input window, operand 2, single buffered']
    #allocation10 [shape = 'u8[32768]{0}', space=vmem, size = 0x8000, scoped, tag = 'input window, operand 5, single buffered']
    #allocation11 [shape = 's32[1]{0}', space=sflag, size = 0x4, scoped, tag = 'scoped memory for tpu_custom_call.1']
    #allocation12 [shape = 'u8[32768]{0}', space=vmem, size = 0x8000, scoped, tag = 'output window, operand 0, single buffered']
    %12 = vsyncpa [#allocation5], 0
    %13 = vsyncpa [#allocation8], 0
    %14 = vsyncpa [#allocation11], 0
    %15 = vsyncpa [#allocation6], 0
    // Predicated region
    $region2: #{tpu_custom_call.1} parent=1 // pred_check
      _
    $region3: #{tpu_custom_call.1} parent=1 // pred_check_branch
      %17 = sbr.rel (0) target = $region5
    $region4: #{tpu_custom_call.1} parent=1 // pred_region
      %s19 = ssub.s32 512, 512
      %20 = vsyncadd [#allocation5], %s19
      %s21 = sshll.u32 [#allocation4], 4
      %s22 = int_to_ptr.vmem [resolvable:$true] %s21
      %27 = dma.hbm_to_vmem [thread:$0]  %s0, 512, %s22, [#allocation5], 64, 64, 4
    $region5: #{tpu_custom_call.1} parent=1 // pred_fallthru
      _
    // Predicated region
    $region6: #{tpu_custom_call.1} parent=1 // pred_check
      _
    $region7: #{tpu_custom_call.1} parent=1 // pred_check_branch
      %29 = sbr.rel (0) target = $region9
    $region8: #{tpu_custom_call.1} parent=1 // pred_region
      %s31 = ssub.s32 768, 768
      %32 = vsyncadd [#allocation8], %s31
      %s33 = sshll.u32 [#allocation7], 4
      %s34 = int_to_ptr.vmem [resolvable:$true] %s33
      %39 = dma.hbm_to_vmem [thread:$0]  %s1, 768, %s34, [#allocation8], 192, 192, 12
    $region9: #{tpu_custom_call.1} parent=1 // pred_fallthru
      _
    // Predicated region
    $region10: #{tpu_custom_call.1} parent=1 // pred_check
      _
    $region11: #{tpu_custom_call.1} parent=1 // pred_check_branch
      %41 = sbr.rel (0) target = $region13
    $region12: #{tpu_custom_call.1} parent=1 // pred_region
      %s43 = ssub.s32 3072, 3072
      %44 = vsyncadd [#allocation8], %s43
      %s45 = sshll.u32 [#allocation9], 4
      %s46 = int_to_ptr.vmem [resolvable:$true] %s45
      %51 = dma.hbm_to_vmem [thread:$0]  %s2, 3072, %s46, [#allocation8], 192, 192, 12
    $region13: #{tpu_custom_call.1} parent=1 // pred_fallthru
      _
    // Predicated region
    $region14: #{tpu_custom_call.1} parent=1 // pred_check
      _
    $region15: #{tpu_custom_call.1} parent=1 // pred_check_branch
      %53 = sbr.rel (0) target = $region17
    $region16: #{tpu_custom_call.1} parent=1 // pred_region
      _
    $region17: #{tpu_custom_call.1} parent=1 // pred_fallthru
      _
    // Predicated region
    $region18: #{tpu_custom_call.1} parent=1 // pred_check
      _
    $region19: #{tpu_custom_call.1} parent=1 // pred_check_branch
      %55 = sbr.rel (0) target = $region21
    $region20: #{tpu_custom_call.1} parent=1 // pred_region
      _
    $region21: #{tpu_custom_call.1} parent=1 // pred_fallthru
      _
    // Predicated region
    $region22: #{tpu_custom_call.1} parent=1 // pred_check
      _
    $region23: #{tpu_custom_call.1} parent=1 // pred_check_branch
      %57 = sbr.rel (0) target = $region25
    $region24: #{tpu_custom_call.1} parent=1 // pred_region
      %s59 = ssub.s32 1024, 1024
      %60 = vsyncadd [#allocation11], %s59
      %s61 = sshll.u32 [#allocation10], 4
      %s62 = int_to_ptr.vmem [resolvable:$true] %s61
      %67 = dma.hbm_to_vmem [thread:$0]  %s5, 1024, %s62, [#allocation11], 64, 64, 4
    $region25: #{tpu_custom_call.1} parent=1 // pred_fallthru
      _
    // Predicated region
    $region26: #{tpu_custom_call.1} parent=1 // pred_check
      _
    $region27: #{tpu_custom_call.1} parent=1 // pred_check_branch
      %69 = sbr.rel (0) target = $region29
    $region28: #{tpu_custom_call.1} parent=1 // pred_region
      _
    $region29: #{tpu_custom_call.1} parent=1 // pred_fallthru
      _
    // Predicated region
    $region30: #{tpu_custom_call.1} parent=1 // pred_check
      _
    $region31: #{tpu_custom_call.1} parent=1 // pred_check_branch
      %71 = sbr.rel (0) target = $region33
    $region32: #{tpu_custom_call.1} parent=1 // pred_region
      %72 = dma.done [#allocation5], 512
    $region33: #{tpu_custom_call.1} parent=1 // pred_fallthru
      _
    // Predicated region
    $region34: #{tpu_custom_call.1} parent=1 // pred_check
      _
    $region35: #{tpu_custom_call.1} parent=1 // pred_check_branch
      %74 = sbr.rel (0) target = $region37
    $region36: #{tpu_custom_call.1} parent=1 // pred_region
      %75 = dma.done [#allocation8], 768
    $region37: #{tpu_custom_call.1} parent=1 // pred_fallthru
      _
    // Predicated region
    $region38: #{tpu_custom_call.1} parent=1 // pred_check
      _
    $region39: #{tpu_custom_call.1} parent=1 // pred_check_branch
      %77 = sbr.rel (0) target = $region41
    $region40: #{tpu_custom_call.1} parent=1 // pred_region
      %78 = dma.done [#allocation8], 3072
    $region41: #{tpu_custom_call.1} parent=1 // pred_fallthru
      _
    // Predicated region
    $region42: #{tpu_custom_call.1} parent=1 // pred_check
      _
    $region43: #{tpu_custom_call.1} parent=1 // pred_check_branch
      %80 = sbr.rel (0) target = $region45
    $region44: #{tpu_custom_call.1} parent=1 // pred_region
      %81 = dma.done [#allocation11], 1024
    $region45: #{tpu_custom_call.1} parent=1 // pred_fallthru
      _
    %v83 = vld [vmem:[#allocation4] sm:$0xf]
    %v84 = vld [vmem:[#allocation4 + $0x4] sm:$0xf]
    %v85 = vld [vmem:[#allocation4 + $0x8] sm:$0xf]
    %v86 = vld [vmem:[#allocation4 + $0xc] sm:$0xf]
    %v87 = vld [vmem:[#allocation4 + $0x10] sm:$0xf]
    %v88 = vld [vmem:[#allocation4 + $0x14] sm:$0xf]
    %v89 = vld [vmem:[#allocation4 + $0x18] sm:$0xf]
    %v90 = vld [vmem:[#allocation4 + $0x1c] sm:$0xf]
    %v91 = vld [vmem:[#allocation7] sm:$0xff]
    %v92 = vld [vmem:[#allocation7 + $0x8] sm:$0xf]
    %v93 = vld [vmem:[#allocation7 + $0xc] sm:$0xff]
    %v94 = vld [vmem:[#allocation7 + $0x14] sm:$0xf]
    %v95 = vld [vmem:[#allocation7 + $0x18] sm:$0xff]
    %v96 = vld [vmem:[#allocation7 + $0x20] sm:$0xf]
    %v97 = vld [vmem:[#allocation7 + $0x24] sm:$0xff]
    %v98 = vld [vmem:[#allocation7 + $0x2c] sm:$0xf]
    %v99 = vld [vmem:[%s3] sm:$0x7]
    %v101 = vlaneseq
    %v102 = vshrl.u32 %v101, 7
    %v103 = vsub.s32 0, %v102
    %v104 = vrot.slane %v99, %v103
    %v105 = vlaneseq
    %v106 = vshrl.u32 %v105, 7
    %v107 = vsub.s32 1, %v106
    %v108 = vrot.slane %v99, %v107
    %v109 = vlaneseq
    %v110 = vshrl.u32 %v109, 7
    %v111 = vsub.s32 2, %v110
    %v112 = vrot.slane %v99, %v111
    %v124 = vunpack.c.l.b16 %v83
    %v125 = vunpack.c.l.b16 %v84
    %v126 = vunpack.c.l.b16 %v85
    %v127 = vunpack.c.l.b16 %v86
    %v128 = vunpack.c.l.b16 %v87
    %v129 = vunpack.c.l.b16 %v88
    %v130 = vunpack.c.l.b16 %v89
    %v131 = vunpack.c.l.b16 %v90
    %v132 = vpack.c.b16 %v125, %v124
    %v133 = vpack.c.b16 %v127, %v126
    %v134 = vpack.c.b16 %v129, %v128
    %v135 = vpack.c.b16 %v131, %v130
    %v144 = vunpack.c.l.b16 %v91
    %v145 = vunpack.c.h.b16 %v91
    %v146 = vunpack.c.l.b16 %v92
    %v147 = vunpack.c.l.b16 %v93
    %v148 = vunpack.c.h.b16 %v93
    %v149 = vunpack.c.l.b16 %v94
    %v150 = vunpack.c.l.b16 %v95
    %v151 = vunpack.c.h.b16 %v95
    %v152 = vunpack.c.l.b16 %v96
    %v153 = vunpack.c.l.b16 %v97
    %v154 = vunpack.c.h.b16 %v97
    %v155 = vunpack.c.l.b16 %v98
    %v156 = vpack.c.b16 %v147, %v144
    %v157 = vpack.c.b16 %v148, %v145
    %v158 = vpack.c.b16 %v149, %v146
    %v159 = vpack.c.b16 %v153, %v150
    %v160 = vpack.c.b16 %v154, %v151
    %v161 = vpack.c.b16 %v155, %v152
    %vm168 = vcmask 261120
    %v170 = vsel %vm168, %v132, 0
    %v173 = vsel %vm168, %v133, 0
    %v176 = vsel %vm168, %v134, 0
    %v179 = vsel %vm168, %v135, 0
    %181 = vmatprep.subr.bf16.mxu0 %v157
    %182 = vmatpush1.bf16.msra.mxu0 %v156
    %183 = vmatprep.subr.bf16.mxu0 %v160
    %184 = vmatpush1.bf16.msra.mxu0 %v159
    %185 = vmatprep.subr.bf16.mxu0 0
    %186 = vmatpush1.bf16.msra.mxu0 0
    %187 = vmatprep.subr.bf16.mxu0 0
    %188 = vmatpush1.bf16.msra.mxu0 0
    %189 = vmatprep.subr.bf16.mxu0 0
    %190 = vmatpush1.bf16.msra.mxu0 0
    %191 = vmatprep.subr.bf16.mxu0 0
    %192 = vmatpush1.bf16.msra.mxu0 0
    %193 = vmatprep.subr.bf16.mxu0 0
    %194 = vmatpush1.bf16.msra.mxu0 0
    %195 = vmatprep.subr.bf16.mxu0 0
    %196 = vmatpush1.bf16.msra.mxu0 0
    %197 = vmatprep.subr.bf16.mxu0 0
    %198 = vmatpush1.bf16.msra.mxu0 0
    %199 = vmatprep.subr.bf16.mxu0 0
    %200 = vmatpush1.bf16.msra.mxu0 0
    %201 = vmatprep.subr.bf16.mxu0 0
    %202 = vmatpush1.bf16.msra.mxu0 0
    %203 = vmatprep.subr.bf16.mxu0 0
    %204 = vmatpush1.bf16.msra.mxu0 0
    %205 = vmatprep.subr.bf16.mxu0 0
    %206 = vmatpush1.bf16.msra.mxu0 0
    %207 = vmatprep.subr.bf16.mxu0 0
    %208 = vmatpush1.bf16.msra.mxu0 0
    %209 = vmatprep.subr.bf16.mxu0 0
    %210 = vmatpush1.bf16.msra.mxu0 0
    %211 = vmatprep.subr.bf16.mxu0 0
    %212 = vmatpush1.bf16.msra.mxu0 0
    %213 = vmatprep.mubr.bf16.mxu0 0
    %214 = vmatmul.mubr.bf16.gmra.mrb[0].mxu0 %v170
    %v215 = vpop.f32.mrb[0].mxu0
    %v216 = vadd.f32 %v104, %v215
    %v217 = vpop.f32.mrb[0].mxu0
    %v218 = vadd.f32 %v108, %v217
    %v219 = vpop.f32.mrb[0].mxu0
    %v220 = vadd.f32 %v104, %v219
    %v221 = vpop.f32.mrb[0].mxu0
    %v222 = vadd.f32 %v108, %v221
    %223 = vmatprep.mubr.bf16.mxu0 0
    %224 = vmatmul.mubr.bf16.gmra.mrb[0].mxu0 %v173
    %v225 = vpop.f32.mrb[0].mxu0
    %v226 = vadd.f32 %v104, %v225
    %v227 = vpop.f32.mrb[0].mxu0
    %v228 = vadd.f32 %v108, %v227
    %v229 = vpop.f32.mrb[0].mxu0
    %v230 = vadd.f32 %v104, %v229
    %v231 = vpop.f32.mrb[0].mxu0
    %v232 = vadd.f32 %v108, %v231
    %233 = vmatprep.mubr.bf16.mxu0 0
    %234 = vmatmul.mubr.bf16.gmra.mrb[0].mxu0 %v176
    %v235 = vpop.f32.mrb[0].mxu0
    %v236 = vadd.f32 %v104, %v235
    %v237 = vpop.f32.mrb[0].mxu0
    %v238 = vadd.f32 %v108, %v237
    %v239 = vpop.f32.mrb[0].mxu0
    %v240 = vadd.f32 %v104, %v239
    %v241 = vpop.f32.mrb[0].mxu0
    %v242 = vadd.f32 %v108, %v241
    %243 = vmatprep.mubr.bf16.mxu0 0
    %244 = vmatmul.mubr.bf16.gmra.mrb[0].mxu0 %v179
    %v245 = vpop.f32.mrb[0].mxu0
    %v246 = vadd.f32 %v104, %v245
    %v247 = vpop.f32.mrb[0].mxu0
    %v248 = vadd.f32 %v108, %v247
    %v249 = vpop.f32.mrb[0].mxu0
    %v250 = vadd.f32 %v104, %v249
    %v251 = vpop.f32.mrb[0].mxu0
    %v252 = vadd.f32 %v108, %v251
    %253 = vdwg.mxu0
    %254 = vmatprep.subr.bf16.mxu0 0
    %255 = vmatpush1.bf16.msra.mxu0 %v158
    %256 = vmatprep.subr.bf16.mxu0 0
    %257 = vmatpush1.bf16.msra.mxu0 %v161
    %258 = vmatprep.subr.bf16.mxu0 0
    %259 = vmatpush1.bf16.msra.mxu0 0
    %260 = vmatprep.subr.bf16.mxu0 0
    %261 = vmatpush1.bf16.msra.mxu0 0
    %262 = vmatprep.subr.bf16.mxu0 0
    %263 = vmatpush1.bf16.msra.mxu0 0
    %264 = vmatprep.subr.bf16.mxu0 0
    %265 = vmatpush1.bf16.msra.mxu0 0
    %266 = vmatprep.subr.bf16.mxu0 0
    %267 = vmatpush1.bf16.msra.mxu0 0
    %268 = vmatprep.subr.bf16.mxu0 0
    %269 = vmatpush1.bf16.msra.mxu0 0
    %270 = vmatprep.subr.bf16.mxu0 0
    %271 = vmatpush1.bf16.msra.mxu0 0
    %272 = vmatprep.subr.bf16.mxu0 0
    %273 = vmatpush1.bf16.msra.mxu0 0
    %274 = vmatprep.subr.bf16.mxu0 0
    %275 = vmatpush1.bf16.msra.mxu0 0
    %276 = vmatprep.subr.bf16.mxu0 0
    %277 = vmatpush1.bf16.msra.mxu0 0
    %278 = vmatprep.subr.bf16.mxu0 0
    %279 = vmatpush1.bf16.msra.mxu0 0
    %280 = vmatprep.subr.bf16.mxu0 0
    %281 = vmatpush1.bf16.msra.mxu0 0
    %282 = vmatprep.subr.bf16.mxu0 0
    %283 = vmatpush1.bf16.msra.mxu0 0
    %284 = vmatprep.subr.bf16.mxu0 0
    %285 = vmatpush1.bf16.msra.mxu0 0
    %286 = vmatprep.mubr.bf16.mxu0 0
    %287 = vmatmul.mubr.bf16.gmra.mrb[0].mxu0 %v170
    %v288 = vpop.f32.mrb[0].mxu0
    %v289 = vadd.f32 %v112, %v288
    %v290 = vpop.f32.mrb[0].mxu0
    %v291 = vpop.f32.mrb[0].mxu0
    %v292 = vadd.f32 %v112, %v291
    %v293 = vpop.f32.mrb[0].mxu0
    %294 = vmatprep.mubr.bf16.mxu0 0
    %295 = vmatmul.mubr.bf16.gmra.mrb[0].mxu0 %v173
    %v296 = vpop.f32.mrb[0].mxu0
    %v297 = vadd.f32 %v112, %v296
    %v298 = vpop.f32.mrb[0].mxu0
    %v299 = vpop.f32.mrb[0].mxu0
    %v300 = vadd.f32 %v112, %v299
    %v301 = vpop.f32.mrb[0].mxu0
    %302 = vmatprep.mubr.bf16.mxu0 0
    %303 = vmatmul.mubr.bf16.gmra.mrb[0].mxu0 %v176
    %v304 = vpop.f32.mrb[0].mxu0
    %v305 = vadd.f32 %v112, %v304
    %v306 = vpop.f32.mrb[0].mxu0
    %v307 = vpop.f32.mrb[0].mxu0
    %v308 = vadd.f32 %v112, %v307
    %v309 = vpop.f32.mrb[0].mxu0
    %310 = vmatprep.mubr.bf16.mxu0 0
    %311 = vmatmul.mubr.bf16.gmra.mrb[0].mxu0 %v179
    %v312 = vpop.f32.mrb[0].mxu0
    %v313 = vadd.f32 %v112, %v312
    %v314 = vpop.f32.mrb[0].mxu0
    %v315 = vpop.f32.mrb[0].mxu0
    %v316 = vadd.f32 %v112, %v315
    %v317 = vpop.f32.mrb[0].mxu0
    %318 = vdwg.mxu0
    %319 = vst [vmem:[#allocation2] sm:$0xff] %v216
    %320 = vst [vmem:[#allocation2 + $0x8] sm:$0xff] %v218
    %321 = vst [vmem:[#allocation2 + $0x10] sm:$0xff] %v289
    %322 = vst [vmem:[#allocation2 + $0x18] sm:$0xff] %v220
    %323 = vst [vmem:[#allocation2 + $0x20] sm:$0xff] %v222
    %324 = vst [vmem:[#allocation2 + $0x28] sm:$0xff] %v292
    %325 = vst [vmem:[#allocation2 + $0x30] sm:$0xff] %v226
    %326 = vst [vmem:[#allocation2 + $0x38] sm:$0xff] %v228
    %327 = vst [vmem:[#allocation2 + $0x40] sm:$0xff] %v297
    %328 = vst [vmem:[#allocation2 + $0x48] sm:$0xff] %v230
    %329 = vst [vmem:[#allocation2 + $0x50] sm:$0xff] %v232
    %330 = vst [vmem:[#allocation2 + $0x58] sm:$0xff] %v300
    %331 = vst [vmem:[#allocation2 + $0x60] sm:$0xff] %v236
    %332 = vst [vmem:[#allocation2 + $0x68] sm:$0xff] %v238
    %333 = vst [vmem:[#allocation2 + $0x70] sm:$0xff] %v305
    %334 = vst [vmem:[#allocation2 + $0x78] sm:$0xff] %v240
    %335 = vst [vmem:[#allocation2 + $0x80] sm:$0xff] %v242
    %336 = vst [vmem:[#allocation2 + $0x88] sm:$0xff] %v308
    %337 = vst [vmem:[#allocation2 + $0x90] sm:$0xff] %v246
    %338 = vst [vmem:[#allocation2 + $0x98] sm:$0xff] %v248
    %339 = vst [vmem:[#allocation2 + $0xa0] sm:$0xff] %v313
    %340 = vst [vmem:[#allocation2 + $0xa8] sm:$0xff] %v250
    %341 = vst [vmem:[#allocation2 + $0xb0] sm:$0xff] %v252
    %342 = vst [vmem:[#allocation2 + $0xb8] sm:$0xff] %v316
    %v343 = vld [vmem:[#allocation9] sm:$0xff]
    %v344 = vld [vmem:[#allocation9 + $0x8] sm:$0xf]
    %v345 = vld [vmem:[#allocation9 + $0xc] sm:$0xff]
    %v346 = vld [vmem:[#allocation9 + $0x14] sm:$0xf]
    %v347 = vld [vmem:[#allocation9 + $0x18] sm:$0xff]
    %v348 = vld [vmem:[#allocation9 + $0x20] sm:$0xf]
    %v349 = vld [vmem:[#allocation9 + $0x24] sm:$0xff]
    %v350 = vld [vmem:[#allocation9 + $0x2c] sm:$0xf]
    %v351 = vld [vmem:[#allocation9 + $0x30] sm:$0xff]
    %v352 = vld [vmem:[#allocation9 + $0x38] sm:$0xf]
    %v353 = vld [vmem:[#allocation9 + $0x3c] sm:$0xff]
    %v354 = vld [vmem:[#allocation9 + $0x44] sm:$0xf]
    %v355 = vld [vmem:[#allocation9 + $0x48] sm:$0xff]
    %v356 = vld [vmem:[#allocation9 + $0x50] sm:$0xf]
    %v357 = vld [vmem:[#allocation9 + $0x54] sm:$0xff]
    %v358 = vld [vmem:[#allocation9 + $0x5c] sm:$0xf]
    %v359 = vld [vmem:[#allocation9 + $0x60] sm:$0xff]
    %v360 = vld [vmem:[#allocation9 + $0x68] sm:$0xf]
    %v361 = vld [vmem:[#allocation9 + $0x6c] sm:$0xff]
    %v362 = vld [vmem:[#allocation9 + $0x74] sm:$0xf]
    %v363 = vld [vmem:[#allocation9 + $0x78] sm:$0xff]
    %v364 = vld [vmem:[#allocation9 + $0x80] sm:$0xf]
    %v365 = vld [vmem:[#allocation9 + $0x84] sm:$0xff]
    %v366 = vld [vmem:[#allocation9 + $0x8c] sm:$0xf]
    %v367 = vld [vmem:[#allocation9 + $0x90] sm:$0xff]
    %v368 = vld [vmem:[#allocation9 + $0x98] sm:$0xf]
    %v369 = vld [vmem:[#allocation9 + $0x9c] sm:$0xff]
    %v370 = vld [vmem:[#allocation9 + $0xa4] sm:$0xf]
    %v371 = vld [vmem:[#allocation9 + $0xa8] sm:$0xff]
    %v372 = vld [vmem:[#allocation9 + $0xb0] sm:$0xf]
    %v373 = vld [vmem:[#allocation9 + $0xb4] sm:$0xff]
    %v374 = vld [vmem:[#allocation9 + $0xbc] sm:$0xf]
    %v375 = vld [vmem:[%s4] sm:$0x1]
    %v377 = vlaneseq
    %v378 = vshrl.u32 %v377, 7
    %v379 = vsub.s32 0, %v378
    %v380 = vrot.slane %v375, %v379
    %v382 = vld [vmem:[#allocation2] sm:$0xff]
    %v383 = vld [vmem:[#allocation2 + $0x8] sm:$0xff]
    %v384 = vld [vmem:[#allocation2 + $0x10] sm:$0xff]
    %v417 = vunpack.c.l.b16 %v343
    %v418 = vunpack.c.h.b16 %v343
    %v419 = vunpack.c.l.b16 %v344
    %v420 = vunpack.c.l.b16 %v345
    %v421 = vunpack.c.h.b16 %v345
    %v422 = vunpack.c.l.b16 %v346
    %v423 = vunpack.c.l.b16 %v347
    %v424 = vunpack.c.h.b16 %v347
    %v425 = vunpack.c.l.b16 %v348
    %v426 = vunpack.c.l.b16 %v349
    %v427 = vunpack.c.h.b16 %v349
    %v428 = vunpack.c.l.b16 %v350
    %v429 = vunpack.c.l.b16 %v351
    %v430 = vunpack.c.h.b16 %v351
    %v431 = vunpack.c.l.b16 %v352
    %v432 = vunpack.c.l.b16 %v353
    %v433 = vunpack.c.h.b16 %v353
    %v434 = vunpack.c.l.b16 %v354
    %v435 = vunpack.c.l.b16 %v355
    %v436 = vunpack.c.h.b16 %v355
    %v437 = vunpack.c.l.b16 %v356
    %v438 = vunpack.c.l.b16 %v357
    %v439 = vunpack.c.h.b16 %v357
    %v440 = vunpack.c.l.b16 %v358
    %v441 = vunpack.c.l.b16 %v359
    %v442 = vunpack.c.h.b16 %v359
    %v443 = vunpack.c.l.b16 %v360
    %v444 = vunpack.c.l.b16 %v361
    %v445 = vunpack.c.h.b16 %v361
    %v446 = vunpack.c.l.b16 %v362
    %v447 = vunpack.c.l.b16 %v363
    %v448 = vunpack.c.h.b16 %v363
    %v449 = vunpack.c.l.b16 %v364
    %v450 = vunpack.c.l.b16 %v365
    %v451 = vunpack.c.h.b16 %v365
    %v452 = vunpack.c.l.b16 %v366
    %v453 = vunpack.c.l.b16 %v367
    %v454 = vunpack.c.h.b16 %v367
    %v455 = vunpack.c.l.b16 %v368
    %v456 = vunpack.c.l.b16 %v369
    %v457 = vunpack.c.h.b16 %v369
    %v458 = vunpack.c.l.b16 %v370
    %v459 = vunpack.c.l.b16 %v371
    %v460 = vunpack.c.h.b16 %v371
    %v461 = vunpack.c.l.b16 %v372
    %v462 = vunpack.c.l.b16 %v373
    %v463 = vunpack.c.h.b16 %v373
    %v464 = vunpack.c.l.b16 %v374
    %v465 = vpack.c.b16 %v420, %v417
    %v466 = vpack.c.b16 %v421, %v418
    %v467 = vpack.c.b16 %v422, %v419
    %v468 = vpack.c.b16 %v426, %v423
    %v469 = vpack.c.b16 %v427, %v424
    %v470 = vpack.c.b16 %v428, %v425
    %v471 = vpack.c.b16 %v432, %v429
    %v472 = vpack.c.b16 %v433, %v430
    %v473 = vpack.c.b16 %v434, %v431
    %v474 = vpack.c.b16 %v438, %v435
    %v475 = vpack.c.b16 %v439, %v436
    %v476 = vpack.c.b16 %v440, %v437
    %v477 = vpack.c.b16 %v444, %v441
    %v478 = vpack.c.b16 %v445, %v442
    %v479 = vpack.c.b16 %v446, %v443
    %v480 = vpack.c.b16 %v450, %v447
    %v481 = vpack.c.b16 %v451, %v448
    %v482 = vpack.c.b16 %v452, %v449
    %v483 = vpack.c.b16 %v456, %v453
    %v484 = vpack.c.b16 %v457, %v454
    %v485 = vpack.c.b16 %v458, %v455
    %v486 = vpack.c.b16 %v462, %v459
    %v487 = vpack.c.b16 %v463, %v460
    %v488 = vpack.c.b16 %v464, %v461
    %513 = vmatprep.subr.bf16.mxu0 %v466
    %514 = vmatpush1.bf16.msra.mxu0 %v465
    %515 = vmatprep.subr.bf16.mxu0 %v469
    %516 = vmatpush1.bf16.msra.mxu0 %v468
    %517 = vmatprep.subr.bf16.mxu0 %v472
    %518 = vmatpush1.bf16.msra.mxu0 %v471
    %519 = vmatprep.subr.bf16.mxu0 %v475
    %520 = vmatpush1.bf16.msra.mxu0 %v474
    %521 = vmatprep.subr.bf16.mxu0 %v478
    %522 = vmatpush1.bf16.msra.mxu0 %v477
    %523 = vmatprep.subr.bf16.mxu0 %v481
    %524 = vmatpush1.bf16.msra.mxu0 %v480
    %525 = vmatprep.subr.bf16.mxu0 %v484
    %526 = vmatpush1.bf16.msra.mxu0 %v483
    %527 = vmatprep.subr.bf16.mxu0 %v487
    %528 = vmatpush1.bf16.msra.mxu0 %v486
    %529 = vmatprep.subr.bf16.mxu0 0
    %530 = vmatpush1.bf16.msra.mxu0 0
    %531 = vmatprep.subr.bf16.mxu0 0
    %532 = vmatpush1.bf16.msra.mxu0 0
    %533 = vmatprep.subr.bf16.mxu0 0
    %534 = vmatpush1.bf16.msra.mxu0 0
    %535 = vmatprep.subr.bf16.mxu0 0
    %536 = vmatpush1.bf16.msra.mxu0 0
    %537 = vmatprep.subr.bf16.mxu0 0
    %538 = vmatpush1.bf16.msra.mxu0 0
    %539 = vmatprep.subr.bf16.mxu0 0
    %540 = vmatpush1.bf16.msra.mxu0 0
    %541 = vmatprep.subr.bf16.mxu0 0
    %542 = vmatpush1.bf16.msra.mxu0 0
    %543 = vmatprep.subr.bf16.mxu0 0
    %544 = vmatpush1.bf16.msra.mxu0 0
    %545 = vmatprep.mubr.bf16.mxu0 0
    %546 = vmatmul.mubr.bf16.gmra.mrb[0].mxu0 0
    %v547 = vpop.f32.mrb[0].mxu0
    %v548 = vadd.f32 0.0, %v547
    %v549 = vpop.f32.mrb[0].mxu0
    %v550 = vadd.f32 0.0, %v549
    %v551 = vpop.f32.mrb[0].mxu0
    %v552 = vpop.f32.mrb[0].mxu0
    %553 = vdwg.mxu0
    %554 = vmatprep.subr.bf16.mxu0 0
    %555 = vmatpush1.bf16.msra.mxu0 %v467
    %556 = vmatprep.subr.bf16.mxu0 0
    %557 = vmatpush1.bf16.msra.mxu0 %v470
    %558 = vmatprep.subr.bf16.mxu0 0
    %559 = vmatpush1.bf16.msra.mxu0 %v473
    %560 = vmatprep.subr.bf16.mxu0 0
    %561 = vmatpush1.bf16.msra.mxu0 %v476
    %562 = vmatprep.subr.bf16.mxu0 0
    %563 = vmatpush1.bf16.msra.mxu0 %v479
    %564 = vmatprep.subr.bf16.mxu0 0
    %565 = vmatpush1.bf16.msra.mxu0 %v482
    %566 = vmatprep.subr.bf16.mxu0 0
    %567 = vmatpush1.bf16.msra.mxu0 %v485
    %568 = vmatprep.subr.bf16.mxu0 0
    %569 = vmatpush1.bf16.msra.mxu0 %v488
    %570 = vmatprep.subr.bf16.mxu0 0
    %571 = vmatpush1.bf16.msra.mxu0 0
    %572 = vmatprep.subr.bf16.mxu0 0
    %573 = vmatpush1.bf16.msra.mxu0 0
    %574 = vmatprep.subr.bf16.mxu0 0
    %575 = vmatpush1.bf16.msra.mxu0 0
    %576 = vmatprep.subr.bf16.mxu0 0
    %577 = vmatpush1.bf16.msra.mxu0 0
    %578 = vmatprep.subr.bf16.mxu0 0
    %579 = vmatpush1.bf16.msra.mxu0 0
    %580 = vmatprep.subr.bf16.mxu0 0
    %581 = vmatpush1.bf16.msra.mxu0 0
    %582 = vmatprep.subr.bf16.mxu0 0
    %583 = vmatpush1.bf16.msra.mxu0 0
    %584 = vmatprep.subr.bf16.mxu0 0
    %585 = vmatpush1.bf16.msra.mxu0 0
    %586 = vmatprep.mubr.bf16.mxu0 0
    %587 = vmatmul.mubr.bf16.gmra.mrb[0].mxu0 0
    %v588 = vpop.f32.mrb[0].mxu0
    %v589 = vadd.f32 0.0, %v588
    %v590 = vpop.f32.mrb[0].mxu0
    %v591 = vpop.f32.mrb[0].mxu0
    %v592 = vpop.f32.mrb[0].mxu0
    %593 = vdwg.mxu0
    %v594 = vadd.f32 %v382, %v548
    %v595 = vxor.u32 %v594, 2147483648
    %v596 = vmul.f32 %v595, 1.442695
    %v597 = vpow.pop %v596
    %v598 = vadd.f32 %v597, 1.0
    %v599 = vrcp.pop %v598
    %v600 = vmul.f32 1.0, %v599
    %v601 = vadd.f32 %v383, %v550
    %v602 = vxor.u32 %v601, 2147483648
    %v603 = vmul.f32 %v602, 1.442695
    %v604 = vpow.pop %v603
    %v605 = vadd.f32 %v604, 1.0
    %v606 = vrcp.pop %v605
    %v607 = vmul.f32 1.0, %v606
    %v608 = vadd.f32 %v589, %v380
    %v609 = vmul.f32 %v600, %v608
    %v610 = vadd.f32 %v384, %v609
    %v611 = vtanh.pop %v610
    %v612 = vsub.f32 1.0, %v607
    %v613 = vmul.f32 %v612, %v611
    %v614 = vmul.f32 %v607, 0.0
    %v615 = vadd.f32 %v613, %v614
    %v616 = vpack.c.bf16 %v615, %v615
    %617 = vst [vmem:[#allocation3] sm:$0xf] %v616
    %s618 = scalar_lea.vmem [#allocation2], 24
    %v619 = vld [vmem:[%s618] sm:$0xff]
    %v620 = vld [vmem:[%s618 + $0x8] sm:$0xff]
    %v621 = vld [vmem:[%s618 + $0x10] sm:$0xff]
    %622 = vmatprep.subr.bf16.mxu0 %v466
    %623 = vmatpush1.bf16.msra.mxu0 %v465
    %624 = vmatprep.subr.bf16.mxu0 %v469
    %625 = vmatpush1.bf16.msra.mxu0 %v468
    %626 = vmatprep.subr.bf16.mxu0 %v472
    %627 = vmatpush1.bf16.msra.mxu0 %v471
    %628 = vmatprep.subr.bf16.mxu0 %v475
    %629 = vmatpush1.bf16.msra.mxu0 %v474
    %630 = vmatprep.subr.bf16.mxu0 %v478
    %631 = vmatpush1.bf16.msra.mxu0 %v477
    %632 = vmatprep.subr.bf16.mxu0 %v481
    %633 = vmatpush1.bf16.msra.mxu0 %v480
    %634 = vmatprep.subr.bf16.mxu0 %v484
    %635 = vmatpush1.bf16.msra.mxu0 %v483
    %636 = vmatprep.subr.bf16.mxu0 %v487
    %637 = vmatpush1.bf16.msra.mxu0 %v486
    %638 = vmatprep.subr.bf16.mxu0 0
    %639 = vmatpush1.bf16.msra.mxu0 0
    %640 = vmatprep.subr.bf16.mxu0 0
    %641 = vmatpush1.bf16.msra.mxu0 0
    %642 = vmatprep.subr.bf16.mxu0 0
    %643 = vmatpush1.bf16.msra.mxu0 0
    %644 = vmatprep.subr.bf16.mxu0 0
    %645 = vmatpush1.bf16.msra.mxu0 0
    %646 = vmatprep.subr.bf16.mxu0 0
    %647 = vmatpush1.bf16.msra.mxu0 0
    %648 = vmatprep.subr.bf16.mxu0 0
    %649 = vmatpush1.bf16.msra.mxu0 0
    %650 = vmatprep.subr.bf16.mxu0 0
    %651 = vmatpush1.bf16.msra.mxu0 0
    %652 = vmatprep.subr.bf16.mxu0 0
    %653 = vmatpush1.bf16.msra.mxu0 0
    %654 = vmatprep.mubr.bf16.mxu0 0
    %655 = vmatmul.mubr.bf16.gmra.mrb[0].mxu0 %v616
    %v656 = vpop.f32.mrb[0].mxu0
    %v657 = vadd.f32 0.0, %v656
    %v658 = vpop.f32.mrb[0].mxu0
    %v659 = vadd.f32 0.0, %v658
    %v660 = vpop.f32.mrb[0].mxu0
    %v661 = vpop.f32.mrb[0].mxu0
    %662 = vdwg.mxu0
    %663 = vmatprep.subr.bf16.mxu0 0
    %664 = vmatpush1.bf16.msra.mxu0 %v467
    %665 = vmatprep.subr.bf16.mxu0 0
    %666 = vmatpush1.bf16.msra.mxu0 %v470
    %667 = vmatprep.subr.bf16.mxu0 0
    %668 = vmatpush1.bf16.msra.mxu0 %v473
    %669 = vmatprep.subr.bf16.mxu0 0
    %670 = vmatpush1.bf16.msra.mxu0 %v476
    %671 = vmatprep.subr.bf16.mxu0 0
    %672 = vmatpush1.bf16.msra.mxu0 %v479
    %673 = vmatprep.subr.bf16.mxu0 0
    %674 = vmatpush1.bf16.msra.mxu0 %v482
    %675 = vmatprep.subr.bf16.mxu0 0
    %676 = vmatpush1.bf16.msra.mxu0 %v485
    %677 = vmatprep.subr.bf16.mxu0 0
    %678 = vmatpush1.bf16.msra.mxu0 %v488
    %679 = vmatprep.subr.bf16.mxu0 0
    %680 = vmatpush1.bf16.msra.mxu0 0
    %681 = vmatprep.subr.bf16.mxu0 0
    %682 = vmatpush1.bf16.msra.mxu0 0
    %683 = vmatprep.subr.bf16.mxu0 0
    %684 = vmatpush1.bf16.msra.mxu0 0
    %685 = vmatprep.subr.bf16.mxu0 0
    %686 = vmatpush1.bf16.msra.mxu0 0
    %687 = vmatprep.subr.bf16.mxu0 0
    %688 = vmatpush1.bf16.msra.mxu0 0
    %689 = vmatprep.subr.bf16.mxu0 0
    %690 = vmatpush1.bf16.msra.mxu0 0
    %691 = vmatprep.subr.bf16.mxu0 0
    %692 = vmatpush1.bf16.msra.mxu0 0
    %693 = vmatprep.subr.bf16.mxu0 0
    %694 = vmatpush1.bf16.msra.mxu0 0
    %695 = vmatprep.mubr.bf16.mxu0 0
    %696 = vmatmul.mubr.bf16.gmra.mrb[0].mxu0 %v616
    %v697 = vpop.f32.mrb[0].mxu0
    %v698 = vadd.f32 0.0, %v697
    %v699 = vpop.f32.mrb[0].mxu0
    %v700 = vpop.f32.mrb[0].mxu0
    %v701 = vpop.f32.mrb[0].mxu0
    %702 = vdwg.mxu0
    %v703 = vadd.f32 %v619, %v657
    %v704 = vxor.u32 %v703, 2147483648
    %v705 = vmul.f32 %v704, 1.442695
    %v706 = vpow.pop %v705
    %v707 = vadd.f32 %v706, 1.0
    %v708 = vrcp.pop %v707
    %v709 = vmul.f32 1.0, %v708
    %v710 = vadd.f32 %v620, %v659
    %v711 = vxor.u32 %v710, 2147483648
    %v712 = vmul.f32 %v711, 1.442695
    %v713 = vpow.pop %v712
    %v714 = vadd.f32 %v713, 1.0
    %v715 = vrcp.pop %v714
    %v716 = vmul.f32 1.0, %v715
    %v717 = vadd.f32 %v698, %v380
    %v718 = vmul.f32 %v709, %v717
    %v719 = vadd.f32 %v621, %v718
    %v720 = vtanh.pop %v719
    %v721 = vsub.f32 1.0, %v716
    %v722 = vmul.f32 %v721, %v720
    %v723 = vmul.f32 %v716, %v615
    %v724 = vadd.f32 %v722, %v723
    %v725 = vpack.c.bf16 %v724, %v724
    %s726 = scalar_lea.vmem [#allocation3], 4
    %727 = vst [vmem:[%s726] sm:$0xf] %v725
    %s728 = scalar_lea.vmem [#allocation2], 48
    %v729 = vld [vmem:[%s728] sm:$0xff]
    %v730 = vld [vmem:[%s728 + $0x8] sm:$0xff]
    %v731 = vld [vmem:[%s728 + $0x10] sm:$0xff]
    %732 = vmatprep.subr.bf16.mxu0 %v466
    %733 = vmatpush1.bf16.msra.mxu0 %v465
    %734 = vmatprep.subr.bf16.mxu0 %v469
    %735 = vmatpush1.bf16.msra.mxu0 %v468
    %736 = vmatprep.subr.bf16.mxu0 %v472
    %737 = vmatpush1.bf16.msra.mxu0 %v471
    %738 = vmatprep.subr.bf16.mxu0 %v475
    %739 = vmatpush1.bf16.msra.mxu0 %v474
    %740 = vmatprep.subr.bf16.mxu0 %v478
    %741 = vmatpush1.bf16.msra.mxu0 %v477
    %742 = vmatprep.subr.bf16.mxu0 %v481
    %743 = vmatpush1.bf16.msra.mxu0 %v480
    %744 = vmatprep.subr.bf16.mxu0 %v484
    %745 = vmatpush1.bf16.msra.mxu0 %v483
    %746 = vmatprep.subr.bf16.mxu0 %v487
    %747 = vmatpush1.bf16.msra.mxu0 %v486
    %748 = vmatprep.subr.bf16.mxu0 0
    %749 = vmatpush1.bf16.msra.mxu0 0
    %750 = vmatprep.subr.bf16.mxu0 0
    %751 = vmatpush1.bf16.msra.mxu0 0
    %752 = vmatprep.subr.bf16.mxu0 0
    %753 = vmatpush1.bf16.msra.mxu0 0
    %754 = vmatprep.subr.bf16.mxu0 0
    %755 = vmatpush1.bf16.msra.mxu0 0
    %756 = vmatprep.subr.bf16.mxu0 0
    %757 = vmatpush1.bf16.msra.mxu0 0
    %758 = vmatprep.subr.bf16.mxu0 0
    %759 = vmatpush1.bf16.msra.mxu0 0
    %760 = vmatprep.subr.bf16.mxu0 0
    %761 = vmatpush1.bf16.msra.mxu0 0
    %762 = vmatprep.subr.bf16.mxu0 0
    %763 = vmatpush1.bf16.msra.mxu0 0
    %764 = vmatprep.mubr.bf16.mxu0 0
    %765 = vmatmul.mubr.bf16.gmra.mrb[0].mxu0 %v725
    %v766 = vpop.f32.mrb[0].mxu0
    %v767 = vadd.f32 0.0, %v766
    %v768 = vpop.f32.mrb[0].mxu0
    %v769 = vadd.f32 0.0, %v768
    %v770 = vpop.f32.mrb[0].mxu0
    %v771 = vpop.f32.mrb[0].mxu0
    %772 = vdwg.mxu0
    %773 = vmatprep.subr.bf16.mxu0 0
    %774 = vmatpush1.bf16.msra.mxu0 %v467
    %775 = vmatprep.subr.bf16.mxu0 0
    %776 = vmatpush1.bf16.msra.mxu0 %v470
    %777 = vmatprep.subr.bf16.mxu0 0
    %778 = vmatpush1.bf16.msra.mxu0 %v473
    %779 = vmatprep.subr.bf16.mxu0 0
    %780 = vmatpush1.bf16.msra.mxu0 %v476
    %781 = vmatprep.subr.bf16.mxu0 0
    %782 = vmatpush1.bf16.msra.mxu0 %v479
    %783 = vmatprep.subr.bf16.mxu0 0
    %784 = vmatpush1.bf16.msra.mxu0 %v482
    %785 = vmatprep.subr.bf16.mxu0 0
    %786 = vmatpush1.bf16.msra.mxu0 %v485
    %787 = vmatprep.subr.bf16.mxu0 0
    %788 = vmatpush1.bf16.msra.mxu0 %v488
    %789 = vmatprep.subr.bf16.mxu0 0
    %790 = vmatpush1.bf16.msra.mxu0 0
    %791 = vmatprep.subr.bf16.mxu0 0
    %792 = vmatpush1.bf16.msra.mxu0 0
    %793 = vmatprep.subr.bf16.mxu0 0
    %794 = vmatpush1.bf16.msra.mxu0 0
    %795 = vmatprep.subr.bf16.mxu0 0
    %796 = vmatpush1.bf16.msra.mxu0 0
    %797 = vmatprep.subr.bf16.mxu0 0
    %798 = vmatpush1.bf16.msra.mxu0 0
    %799 = vmatprep.subr.bf16.mxu0 0
    %800 = vmatpush1.bf16.msra.mxu0 0
    %801 = vmatprep.subr.bf16.mxu0 0
    %802 = vmatpush1.bf16.msra.mxu0 0
    %803 = vmatprep.subr.bf16.mxu0 0
    %804 = vmatpush1.bf16.msra.mxu0 0
    %805 = vmatprep.mubr.bf16.mxu0 0
    %806 = vmatmul.mubr.bf16.gmra.mrb[0].mxu0 %v725
    %v807 = vpop.f32.mrb[0].mxu0
    %v808 = vadd.f32 0.0, %v807
    %v809 = vpop.f32.mrb[0].mxu0
    %v810 = vpop.f32.mrb[0].mxu0
    %v811 = vpop.f32.mrb[0].mxu0
    %812 = vdwg.mxu0
    %v813 = vadd.f32 %v729, %v767
    %v814 = vxor.u32 %v813, 2147483648
    %v815 = vmul.f32 %v814, 1.442695
    %v816 = vpow.pop %v815
    %v817 = vadd.f32 %v816, 1.0
    %v818 = vrcp.pop %v817
    %v819 = vmul.f32 1.0, %v818
    %v820 = vadd.f32 %v730, %v769
    %v821 = vxor.u32 %v820, 2147483648
    %v822 = vmul.f32 %v821, 1.442695
    %v823 = vpow.pop %v822
    %v824 = vadd.f32 %v823, 1.0
    %v825 = vrcp.pop %v824
    %v826 = vmul.f32 1.0, %v825
    %v827 = vadd.f32 %v808, %v380
    %v828 = vmul.f32 %v819, %v827
    %v829 = vadd.f32 %v731, %v828
    %v830 = vtanh.pop %v829
    %v831 = vsub.f32 1.0, %v826
    %v832 = vmul.f32 %v831, %v830
    %v833 = vmul.f32 %v826, %v724
    %v834 = vadd.f32 %v832, %v833
    %v835 = vpack.c.bf16 %v834, %v834
    %s836 = scalar_lea.vmem [#allocation3], 8
    %837 = vst [vmem:[%s836] sm:$0xf] %v835
    %s838 = scalar_lea.vmem [#allocation2], 72
    %v839 = vld [vmem:[%s838] sm:$0xff]
    %v840 = vld [vmem:[%s838 + $0x8] sm:$0xff]
    %v841 = vld [vmem:[%s838 + $0x10] sm:$0xff]
    %842 = vmatprep.subr.bf16.mxu0 %v466
    %843 = vmatpush1.bf16.msra.mxu0 %v465
    %844 = vmatprep.subr.bf16.mxu0 %v469
    %845 = vmatpush1.bf16.msra.mxu0 %v468
    %846 = vmatprep.subr.bf16.mxu0 %v472
    %847 = vmatpush1.bf16.msra.mxu0 %v471
    %848 = vmatprep.subr.bf16.mxu0 %v475
    %849 = vmatpush1.bf16.msra.mxu0 %v474
    %850 = vmatprep.subr.bf16.mxu0 %v478
    %851 = vmatpush1.bf16.msra.mxu0 %v477
    %852 = vmatprep.subr.bf16.mxu0 %v481
    %853 = vmatpush1.bf16.msra.mxu0 %v480
    %854 = vmatprep.subr.bf16.mxu0 %v484
    %855 = vmatpush1.bf16.msra.mxu0 %v483
    %856 = vmatprep.subr.bf16.mxu0 %v487
    %857 = vmatpush1.bf16.msra.mxu0 %v486
    %858 = vmatprep.subr.bf16.mxu0 0
    %859 = vmatpush1.bf16.msra.mxu0 0
    %860 = vmatprep.subr.bf16.mxu0 0
    %861 = vmatpush1.bf16.msra.mxu0 0
    %862 = vmatprep.subr.bf16.mxu0 0
    %863 = vmatpush1.bf16.msra.mxu0 0
    %864 = vmatprep.subr.bf16.mxu0 0
    %865 = vmatpush1.bf16.msra.mxu0 0
    %866 = vmatprep.subr.bf16.mxu0 0
    %867 = vmatpush1.bf16.msra.mxu0 0
    %868 = vmatprep.subr.bf16.mxu0 0
    %869 = vmatpush1.bf16.msra.mxu0 0
    %870 = vmatprep.subr.bf16.mxu0 0
    %871 = vmatpush1.bf16.msra.mxu0 0
    %872 = vmatprep.subr.bf16.mxu0 0
    %873 = vmatpush1.bf16.msra.mxu0 0
    %874 = vmatprep.mubr.bf16.mxu0 0
    %875 = vmatmul.mubr.bf16.gmra.mrb[0].mxu0 %v835
    %v876 = vpop.f32.mrb[0].mxu0
    %v877 = vadd.f32 0.0, %v876
    %v878 = vpop.f32.mrb[0].mxu0
    %v879 = vadd.f32 0.0, %v878
    %v880 = vpop.f32.mrb[0].mxu0
    %v881 = vpop.f32.mrb[0].mxu0
    %882 = vdwg.mxu0
    %883 = vmatprep.subr.bf16.mxu0 0
    %884 = vmatpush1.bf16.msra.mxu0 %v467
    %885 = vmatprep.subr.bf16.mxu0 0
    %886 = vmatpush1.bf16.msra.mxu0 %v470
    %887 = vmatprep.subr.bf16.mxu0 0
    %888 = vmatpush1.bf16.msra.mxu0 %v473
    %889 = vmatprep.subr.bf16.mxu0 0
    %890 = vmatpush1.bf16.msra.mxu0 %v476
    %891 = vmatprep.subr.bf16.mxu0 0
    %892 = vmatpush1.bf16.msra.mxu0 %v479
    %893 = vmatprep.subr.bf16.mxu0 0
    %894 = vmatpush1.bf16.msra.mxu0 %v482
    %895 = vmatprep.subr.bf16.mxu0 0
    %896 = vmatpush1.bf16.msra.mxu0 %v485
    %897 = vmatprep.subr.bf16.mxu0 0
    %898 = vmatpush1.bf16.msra.mxu0 %v488
    %899 = vmatprep.subr.bf16.mxu0 0
    %900 = vmatpush1.bf16.msra.mxu0 0
    %901 = vmatprep.subr.bf16.mxu0 0
    %902 = vmatpush1.bf16.msra.mxu0 0
    %903 = vmatprep.subr.bf16.mxu0 0
    %904 = vmatpush1.bf16.msra.mxu0 0
    %905 = vmatprep.subr.bf16.mxu0 0
    %906 = vmatpush1.bf16.msra.mxu0 0
    %907 = vmatprep.subr.bf16.mxu0 0
    %908 = vmatpush1.bf16.msra.mxu0 0
    %909 = vmatprep.subr.bf16.mxu0 0
    %910 = vmatpush1.bf16.msra.mxu0 0
    %911 = vmatprep.subr.bf16.mxu0 0
    %912 = vmatpush1.bf16.msra.mxu0 0
    %913 = vmatprep.subr.bf16.mxu0 0
    %914 = vmatpush1.bf16.msra.mxu0 0
    %915 = vmatprep.mubr.bf16.mxu0 0
    %916 = vmatmul.mubr.bf16.gmra.mrb[0].mxu0 %v835
    %v917 = vpop.f32.mrb[0].mxu0
    %v918 = vadd.f32 0.0, %v917
    %v919 = vpop.f32.mrb[0].mxu0
    %v920 = vpop.f32.mrb[0].mxu0
    %v921 = vpop.f32.mrb[0].mxu0
    %922 = vdwg.mxu0
    %v923 = vadd.f32 %v839, %v877
    %v924 = vxor.u32 %v923, 2147483648
    %v925 = vmul.f32 %v924, 1.442695
    %v926 = vpow.pop %v925
    %v927 = vadd.f32 %v926, 1.0
    %v928 = vrcp.pop %v927
    %v929 = vmul.f32 1.0, %v928
    %v930 = vadd.f32 %v840, %v879
    %v931 = vxor.u32 %v930, 2147483648
    %v932 = vmul.f32 %v931, 1.442695
    %v933 = vpow.pop %v932
    %v934 = vadd.f32 %v933, 1.0
    %v935 = vrcp.pop %v934
    %v936 = vmul.f32 1.0, %v935
    %v937 = vadd.f32 %v918, %v380
    %v938 = vmul.f32 %v929, %v937
    %v939 = vadd.f32 %v841, %v938
    %v940 = vtanh.pop %v939
    %v941 = vsub.f32 1.0, %v936
    %v942 = vmul.f32 %v941, %v940
    %v943 = vmul.f32 %v936, %v834
    %v944 = vadd.f32 %v942, %v943
    %v945 = vpack.c.bf16 %v944, %v944
    %s946 = scalar_lea.vmem [#allocation3], 12
    %947 = vst [vmem:[%s946] sm:$0xf] %v945
    %s948 = scalar_lea.vmem [#allocation2], 96
    %v949 = vld [vmem:[%s948] sm:$0xff]
    %v950 = vld [vmem:[%s948 + $0x8] sm:$0xff]
    %v951 = vld [vmem:[%s948 + $0x10] sm:$0xff]
    %952 = vmatprep.subr.bf16.mxu0 %v466
    %953 = vmatpush1.bf16.msra.mxu0 %v465
    %954 = vmatprep.subr.bf16.mxu0 %v469
    %955 = vmatpush1.bf16.msra.mxu0 %v468
    %956 = vmatprep.subr.bf16.mxu0 %v472
    %957 = vmatpush1.bf16.msra.mxu0 %v471
    %958 = vmatprep.subr.bf16.mxu0 %v475
    %959 = vmatpush1.bf16.msra.mxu0 %v474
    %960 = vmatprep.subr.bf16.mxu0 %v478
    %961 = vmatpush1.bf16.msra.mxu0 %v477
    %962 = vmatprep.subr.bf16.mxu0 %v481
    %963 = vmatpush1.bf16.msra.mxu0 %v480
    %964 = vmatprep.subr.bf16.mxu0 %v484
    %965 = vmatpush1.bf16.msra.mxu0 %v483
    %966 = vmatprep.subr.bf16.mxu0 %v487
    %967 = vmatpush1.bf16.msra.mxu0 %v486
    %968 = vmatprep.subr.bf16.mxu0 0
    %969 = vmatpush1.bf16.msra.mxu0 0
    %970 = vmatprep.subr.bf16.mxu0 0
    %971 = vmatpush1.bf16.msra.mxu0 0
    %972 = vmatprep.subr.bf16.mxu0 0
    %973 = vmatpush1.bf16.msra.mxu0 0
    %974 = vmatprep.subr.bf16.mxu0 0
    %975 = vmatpush1.bf16.msra.mxu0 0
    %976 = vmatprep.subr.bf16.mxu0 0
    %977 = vmatpush1.bf16.msra.mxu0 0
    %978 = vmatprep.subr.bf16.mxu0 0
    %979 = vmatpush1.bf16.msra.mxu0 0
    %980 = vmatprep.subr.bf16.mxu0 0
    %981 = vmatpush1.bf16.msra.mxu0 0
    %982 = vmatprep.subr.bf16.mxu0 0
    %983 = vmatpush1.bf16.msra.mxu0 0
    %984 = vmatprep.mubr.bf16.mxu0 0
    %985 = vmatmul.mubr.bf16.gmra.mrb[0].mxu0 %v945
    %v986 = vpop.f32.mrb[0].mxu0
    %v987 = vadd.f32 0.0, %v986
    %v988 = vpop.f32.mrb[0].mxu0
    %v989 = vadd.f32 0.0, %v988
    %v990 = vpop.f32.mrb[0].mxu0
    %v991 = vpop.f32.mrb[0].mxu0
    %992 = vdwg.mxu0
    %993 = vmatprep.subr.bf16.mxu0 0
    %994 = vmatpush1.bf16.msra.mxu0 %v467
    %995 = vmatprep.subr.bf16.mxu0 0
    %996 = vmatpush1.bf16.msra.mxu0 %v470
    %997 = vmatprep.subr.bf16.mxu0 0
    %998 = vmatpush1.bf16.msra.mxu0 %v473
    %999 = vmatprep.subr.bf16.mxu0 0
    %1000 = vmatpush1.bf16.msra.mxu0 %v476
    %1001 = vmatprep.subr.bf16.mxu0 0
    %1002 = vmatpush1.bf16.msra.mxu0 %v479
    %1003 = vmatprep.subr.bf16.mxu0 0
    %1004 = vmatpush1.bf16.msra.mxu0 %v482
    %1005 = vmatprep.subr.bf16.mxu0 0
    %1006 = vmatpush1.bf16.msra.mxu0 %v485
    %1007 = vmatprep.subr.bf16.mxu0 0
    %1008 = vmatpush1.bf16.msra.mxu0 %v488
    %1009 = vmatprep.subr.bf16.mxu0 0
    %1010 = vmatpush1.bf16.msra.mxu0 0
    %1011 = vmatprep.subr.bf16.mxu0 0
    %1012 = vmatpush1.bf16.msra.mxu0 0
    %1013 = vmatprep.subr.bf16.mxu0 0
    %1014 = vmatpush1.bf16.msra.mxu0 0
    %1015 = vmatprep.subr.bf16.mxu0 0
    %1016 = vmatpush1.bf16.msra.mxu0 0
    %1017 = vmatprep.subr.bf16.mxu0 0
    %1018 = vmatpush1.bf16.msra.mxu0 0
    %1019 = vmatprep.subr.bf16.mxu0 0
    %1020 = vmatpush1.bf16.msra.mxu0 0
    %1021 = vmatprep.subr.bf16.mxu0 0
    %1022 = vmatpush1.bf16.msra.mxu0 0
    %1023 = vmatprep.subr.bf16.mxu0 0
    %1024 = vmatpush1.bf16.msra.mxu0 0
    %1025 = vmatprep.mubr.bf16.mxu0 0
    %1026 = vmatmul.mubr.bf16.gmra.mrb[0].mxu0 %v945
    %v1027 = vpop.f32.mrb[0].mxu0
    %v1028 = vadd.f32 0.0, %v1027
    %v1029 = vpop.f32.mrb[0].mxu0
    %v1030 = vpop.f32.mrb[0].mxu0
    %v1031 = vpop.f32.mrb[0].mxu0
    %1032 = vdwg.mxu0
    %v1033 = vadd.f32 %v949, %v987
    %v1034 = vxor.u32 %v1033, 2147483648
    %v1035 = vmul.f32 %v1034, 1.442695
    %v1036 = vpow.pop %v1035
    %v1037 = vadd.f32 %v1036, 1.0
    %v1038 = vrcp.pop %v1037
    %v1039 = vmul.f32 1.0, %v1038
    %v1040 = vadd.f32 %v950, %v989
    %v1041 = vxor.u32 %v1040, 2147483648
    %v1042 = vmul.f32 %v1041, 1.442695
    %v1043 = vpow.pop %v1042
    %v1044 = vadd.f32 %v1043, 1.0
    %v1045 = vrcp.pop %v1044
    %v1046 = vmul.f32 1.0, %v1045
    %v1047 = vadd.f32 %v1028, %v380
    %v1048 = vmul.f32 %v1039, %v1047
    %v1049 = vadd.f32 %v951, %v1048
    %v1050 = vtanh.pop %v1049
    %v1051 = vsub.f32 1.0, %v1046
    %v1052 = vmul.f32 %v1051, %v1050
    %v1053 = vmul.f32 %v1046, %v944
    %v1054 = vadd.f32 %v1052, %v1053
    %v1055 = vpack.c.bf16 %v1054, %v1054
    %s1056 = scalar_lea.vmem [#allocation3], 16
    %1057 = vst [vmem:[%s1056] sm:$0xf] %v1055
    %s1058 = scalar_lea.vmem [#allocation2], 120
    %v1059 = vld [vmem:[%s1058] sm:$0xff]
    %v1060 = vld [vmem:[%s1058 + $0x8] sm:$0xff]
    %v1061 = vld [vmem:[%s1058 + $0x10] sm:$0xff]
    %1062 = vmatprep.subr.bf16.mxu0 %v466
    %1063 = vmatpush1.bf16.msra.mxu0 %v465
    %1064 = vmatprep.subr.bf16.mxu0 %v469
    %1065 = vmatpush1.bf16.msra.mxu0 %v468
    %1066 = vmatprep.subr.bf16.mxu0 %v472
    %1067 = vmatpush1.bf16.msra.mxu0 %v471
    %1068 = vmatprep.subr.bf16.mxu0 %v475
    %1069 = vmatpush1.bf16.msra.mxu0 %v474
    %1070 = vmatprep.subr.bf16.mxu0 %v478
    %1071 = vmatpush1.bf16.msra.mxu0 %v477
    %1072 = vmatprep.subr.bf16.mxu0 %v481
    %1073 = vmatpush1.bf16.msra.mxu0 %v480
    %1074 = vmatprep.subr.bf16.mxu0 %v484
    %1075 = vmatpush1.bf16.msra.mxu0 %v483
    %1076 = vmatprep.subr.bf16.mxu0 %v487
    %1077 = vmatpush1.bf16.msra.mxu0 %v486
    %1078 = vmatprep.subr.bf16.mxu0 0
    %1079 = vmatpush1.bf16.msra.mxu0 0
    %1080 = vmatprep.subr.bf16.mxu0 0
    %1081 = vmatpush1.bf16.msra.mxu0 0
    %1082 = vmatprep.subr.bf16.mxu0 0
    %1083 = vmatpush1.bf16.msra.mxu0 0
    %1084 = vmatprep.subr.bf16.mxu0 0
    %1085 = vmatpush1.bf16.msra.mxu0 0
    %1086 = vmatprep.subr.bf16.mxu0 0
    %1087 = vmatpush1.bf16.msra.mxu0 0
    %1088 = vmatprep.subr.bf16.mxu0 0
    %1089 = vmatpush1.bf16.msra.mxu0 0
    %1090 = vmatprep.subr.bf16.mxu0 0
    %1091 = vmatpush1.bf16.msra.mxu0 0
    %1092 = vmatprep.subr.bf16.mxu0 0
    %1093 = vmatpush1.bf16.msra.mxu0 0
    %1094 = vmatprep.mubr.bf16.mxu0 0
    %1095 = vmatmul.mubr.bf16.gmra.mrb[0].mxu0 %v1055
    %v1096 = vpop.f32.mrb[0].mxu0
    %v1097 = vadd.f32 0.0, %v1096
    %v1098 = vpop.f32.mrb[0].mxu0
    %v1099 = vadd.f32 0.0, %v1098
    %v1100 = vpop.f32.mrb[0].mxu0
    %v1101 = vpop.f32.mrb[0].mxu0
    %1102 = vdwg.mxu0
    %1103 = vmatprep.subr.bf16.mxu0 0
    %1104 = vmatpush1.bf16.msra.mxu0 %v467
    %1105 = vmatprep.subr.bf16.mxu0 0
    %1106 = vmatpush1.bf16.msra.mxu0 %v470
    %1107 = vmatprep.subr.bf16.mxu0 0
    %1108 = vmatpush1.bf16.msra.mxu0 %v473
    %1109 = vmatprep.subr.bf16.mxu0 0
    %1110 = vmatpush1.bf16.msra.mxu0 %v476
    %1111 = vmatprep.subr.bf16.mxu0 0
    %1112 = vmatpush1.bf16.msra.mxu0 %v479
    %1113 = vmatprep.subr.bf16.mxu0 0
    %1114 = vmatpush1.bf16.msra.mxu0 %v482
    %1115 = vmatprep.subr.bf16.mxu0 0
    %1116 = vmatpush1.bf16.msra.mxu0 %v485
    %1117 = vmatprep.subr.bf16.mxu0 0
    %1118 = vmatpush1.bf16.msra.mxu0 %v488
    %1119 = vmatprep.subr.bf16.mxu0 0
    %1120 = vmatpush1.bf16.msra.mxu0 0
    %1121 = vmatprep.subr.bf16.mxu0 0
    %1122 = vmatpush1.bf16.msra.mxu0 0
    %1123 = vmatprep.subr.bf16.mxu0 0
    %1124 = vmatpush1.bf16.msra.mxu0 0
    %1125 = vmatprep.subr.bf16.mxu0 0
    %1126 = vmatpush1.bf16.msra.mxu0 0
    %1127 = vmatprep.subr.bf16.mxu0 0
    %1128 = vmatpush1.bf16.msra.mxu0 0
    %1129 = vmatprep.subr.bf16.mxu0 0
    %1130 = vmatpush1.bf16.msra.mxu0 0
    %1131 = vmatprep.subr.bf16.mxu0 0
    %1132 = vmatpush1.bf16.msra.mxu0 0
    %1133 = vmatprep.subr.bf16.mxu0 0
    %1134 = vmatpush1.bf16.msra.mxu0 0
    %1135 = vmatprep.mubr.bf16.mxu0 0
    %1136 = vmatmul.mubr.bf16.gmra.mrb[0].mxu0 %v1055
    %v1137 = vpop.f32.mrb[0].mxu0
    %v1138 = vadd.f32 0.0, %v1137
    %v1139 = vpop.f32.mrb[0].mxu0
    %v1140 = vpop.f32.mrb[0].mxu0
    %v1141 = vpop.f32.mrb[0].mxu0
    %1142 = vdwg.mxu0
    %v1143 = vadd.f32 %v1059, %v1097
    %v1144 = vxor.u32 %v1143, 2147483648
    %v1145 = vmul.f32 %v1144, 1.442695
    %v1146 = vpow.pop %v1145
    %v1147 = vadd.f32 %v1146, 1.0
    %v1148 = vrcp.pop %v1147
    %v1149 = vmul.f32 1.0, %v1148
    %v1150 = vadd.f32 %v1060, %v1099
    %v1151 = vxor.u32 %v1150, 2147483648
    %v1152 = vmul.f32 %v1151, 1.442695
    %v1153 = vpow.pop %v1152
    %v1154 = vadd.f32 %v1153, 1.0
    %v1155 = vrcp.pop %v1154
    %v1156 = vmul.f32 1.0, %v1155
    %v1157 = vadd.f32 %v1138, %v380
    %v1158 = vmul.f32 %v1149, %v1157
    %v1159 = vadd.f32 %v1061, %v1158
    %v1160 = vtanh.pop %v1159
    %v1161 = vsub.f32 1.0, %v1156
    %v1162 = vmul.f32 %v1161, %v1160
    %v1163 = vmul.f32 %v1156, %v1054
    %v1164 = vadd.f32 %v1162, %v1163
    %v1165 = vpack.c.bf16 %v1164, %v1164
    %s1166 = scalar_lea.vmem [#allocation3], 20
    %1167 = vst [vmem:[%s1166] sm:$0xf] %v1165
    %s1168 = scalar_lea.vmem [#allocation2], 144
    %v1169 = vld [vmem:[%s1168] sm:$0xff]
    %v1170 = vld [vmem:[%s1168 + $0x8] sm:$0xff]
    %v1171 = vld [vmem:[%s1168 + $0x10] sm:$0xff]
    %1172 = vmatprep.subr.bf16.mxu0 %v466
    %1173 = vmatpush1.bf16.msra.mxu0 %v465
    %1174 = vmatprep.subr.bf16.mxu0 %v469
    %1175 = vmatpush1.bf16.msra.mxu0 %v468
    %1176 = vmatprep.subr.bf16.mxu0 %v472
    %1177 = vmatpush1.bf16.msra.mxu0 %v471
    %1178 = vmatprep.subr.bf16.mxu0 %v475
    %1179 = vmatpush1.bf16.msra.mxu0 %v474
    %1180 = vmatprep.subr.bf16.mxu0 %v478
    %1181 = vmatpush1.bf16.msra.mxu0 %v477
    %1182 = vmatprep.subr.bf16.mxu0 %v481
    %1183 = vmatpush1.bf16.msra.mxu0 %v480
    %1184 = vmatprep.subr.bf16.mxu0 %v484
    %1185 = vmatpush1.bf16.msra.mxu0 %v483
    %1186 = vmatprep.subr.bf16.mxu0 %v487
    %1187 = vmatpush1.bf16.msra.mxu0 %v486
    %1188 = vmatprep.subr.bf16.mxu0 0
    %1189 = vmatpush1.bf16.msra.mxu0 0
    %1190 = vmatprep.subr.bf16.mxu0 0
    %1191 = vmatpush1.bf16.msra.mxu0 0
    %1192 = vmatprep.subr.bf16.mxu0 0
    %1193 = vmatpush1.bf16.msra.mxu0 0
    %1194 = vmatprep.subr.bf16.mxu0 0
    %1195 = vmatpush1.bf16.msra.mxu0 0
    %1196 = vmatprep.subr.bf16.mxu0 0
    %1197 = vmatpush1.bf16.msra.mxu0 0
    %1198 = vmatprep.subr.bf16.mxu0 0
    %1199 = vmatpush1.bf16.msra.mxu0 0
    %1200 = vmatprep.subr.bf16.mxu0 0
    %1201 = vmatpush1.bf16.msra.mxu0 0
    %1202 = vmatprep.subr.bf16.mxu0 0
    %1203 = vmatpush1.bf16.msra.mxu0 0
    %1204 = vmatprep.mubr.bf16.mxu0 0
    %1205 = vmatmul.mubr.bf16.gmra.mrb[0].mxu0 %v1165
    %v1206 = vpop.f32.mrb[0].mxu0
    %v1207 = vadd.f32 0.0, %v1206
    %v1208 = vpop.f32.mrb[0].mxu0
    %v1209 = vadd.f32 0.0, %v1208
    %v1210 = vpop.f32.mrb[0].mxu0
    %v1211 = vpop.f32.mrb[0].mxu0
    %1212 = vdwg.mxu0
    %1213 = vmatprep.subr.bf16.mxu0 0
    %1214 = vmatpush1.bf16.msra.mxu0 %v467
    %1215 = vmatprep.subr.bf16.mxu0 0
    %1216 = vmatpush1.bf16.msra.mxu0 %v470
    %1217 = vmatprep.subr.bf16.mxu0 0
    %1218 = vmatpush1.bf16.msra.mxu0 %v473
    %1219 = vmatprep.subr.bf16.mxu0 0
    %1220 = vmatpush1.bf16.msra.mxu0 %v476
    %1221 = vmatprep.subr.bf16.mxu0 0
    %1222 = vmatpush1.bf16.msra.mxu0 %v479
    %1223 = vmatprep.subr.bf16.mxu0 0
    %1224 = vmatpush1.bf16.msra.mxu0 %v482
    %1225 = vmatprep.subr.bf16.mxu0 0
    %1226 = vmatpush1.bf16.msra.mxu0 %v485
    %1227 = vmatprep.subr.bf16.mxu0 0
    %1228 = vmatpush1.bf16.msra.mxu0 %v488
    %1229 = vmatprep.subr.bf16.mxu0 0
    %1230 = vmatpush1.bf16.msra.mxu0 0
    %1231 = vmatprep.subr.bf16.mxu0 0
    %1232 = vmatpush1.bf16.msra.mxu0 0
    %1233 = vmatprep.subr.bf16.mxu0 0
    %1234 = vmatpush1.bf16.msra.mxu0 0
    %1235 = vmatprep.subr.bf16.mxu0 0
    %1236 = vmatpush1.bf16.msra.mxu0 0
    %1237 = vmatprep.subr.bf16.mxu0 0
    %1238 = vmatpush1.bf16.msra.mxu0 0
    %1239 = vmatprep.subr.bf16.mxu0 0
    %1240 = vmatpush1.bf16.msra.mxu0 0
    %1241 = vmatprep.subr.bf16.mxu0 0
    %1242 = vmatpush1.bf16.msra.mxu0 0
    %1243 = vmatprep.subr.bf16.mxu0 0
    %1244 = vmatpush1.bf16.msra.mxu0 0
    %1245 = vmatprep.mubr.bf16.mxu0 0
    %1246 = vmatmul.mubr.bf16.gmra.mrb[0].mxu0 %v1165
    %v1247 = vpop.f32.mrb[0].mxu0
    %v1248 = vadd.f32 0.0, %v1247
    %v1249 = vpop.f32.mrb[0].mxu0
    %v1250 = vpop.f32.mrb[0].mxu0
    %v1251 = vpop.f32.mrb[0].mxu0
    %1252 = vdwg.mxu0
    %v1253 = vadd.f32 %v1169, %v1207
    %v1254 = vxor.u32 %v1253, 2147483648
    %v1255 = vmul.f32 %v1254, 1.442695
    %v1256 = vpow.pop %v1255
    %v1257 = vadd.f32 %v1256, 1.0
    %v1258 = vrcp.pop %v1257
    %v1259 = vmul.f32 1.0, %v1258
    %v1260 = vadd.f32 %v1170, %v1209
    %v1261 = vxor.u32 %v1260, 2147483648
    %v1262 = vmul.f32 %v1261, 1.442695
    %v1263 = vpow.pop %v1262
    %v1264 = vadd.f32 %v1263, 1.0
    %v1265 = vrcp.pop %v1264
    %v1266 = vmul.f32 1.0, %v1265
    %v1267 = vadd.f32 %v1248, %v380
    %v1268 = vmul.f32 %v1259, %v1267
    %v1269 = vadd.f32 %v1171, %v1268
    %v1270 = vtanh.pop %v1269
    %v1271 = vsub.f32 1.0, %v1266
    %v1272 = vmul.f32 %v1271, %v1270
    %v1273 = vmul.f32 %v1266, %v1164
    %v1274 = vadd.f32 %v1272, %v1273
    %v1275 = vpack.c.bf16 %v1274, %v1274
    %s1276 = scalar_lea.vmem [#allocation3], 24
    %1277 = vst [vmem:[%s1276] sm:$0xf] %v1275
    %s1278 = scalar_lea.vmem [#allocation2], 168
    %v1279 = vld [vmem:[%s1278] sm:$0xff]
    %v1280 = vld [vmem:[%s1278 + $0x8] sm:$0xff]
    %v1281 = vld [vmem:[%s1278 + $0x10] sm:$0xff]
    %1282 = vmatprep.subr.bf16.mxu0 %v466
    %1283 = vmatpush1.bf16.msra.mxu0 %v465
    %1284 = vmatprep.subr.bf16.mxu0 %v469
    %1285 = vmatpush1.bf16.msra.mxu0 %v468
    %1286 = vmatprep.subr.bf16.mxu0 %v472
    %1287 = vmatpush1.bf16.msra.mxu0 %v471
    %1288 = vmatprep.subr.bf16.mxu0 %v475
    %1289 = vmatpush1.bf16.msra.mxu0 %v474
    %1290 = vmatprep.subr.bf16.mxu0 %v478
    %1291 = vmatpush1.bf16.msra.mxu0 %v477
    %1292 = vmatprep.subr.bf16.mxu0 %v481
    %1293 = vmatpush1.bf16.msra.mxu0 %v480
    %1294 = vmatprep.subr.bf16.mxu0 %v484
    %1295 = vmatpush1.bf16.msra.mxu0 %v483
    %1296 = vmatprep.subr.bf16.mxu0 %v487
    %1297 = vmatpush1.bf16.msra.mxu0 %v486
    %1298 = vmatprep.subr.bf16.mxu0 0
    %1299 = vmatpush1.bf16.msra.mxu0 0
    %1300 = vmatprep.subr.bf16.mxu0 0
    %1301 = vmatpush1.bf16.msra.mxu0 0
    %1302 = vmatprep.subr.bf16.mxu0 0
    %1303 = vmatpush1.bf16.msra.mxu0 0
    %1304 = vmatprep.subr.bf16.mxu0 0
    %1305 = vmatpush1.bf16.msra.mxu0 0
    %1306 = vmatprep.subr.bf16.mxu0 0
    %1307 = vmatpush1.bf16.msra.mxu0 0
    %1308 = vmatprep.subr.bf16.mxu0 0
    %1309 = vmatpush1.bf16.msra.mxu0 0
    %1310 = vmatprep.subr.bf16.mxu0 0
    %1311 = vmatpush1.bf16.msra.mxu0 0
    %1312 = vmatprep.subr.bf16.mxu0 0
    %1313 = vmatpush1.bf16.msra.mxu0 0
    %1314 = vmatprep.mubr.bf16.mxu0 0
    %1315 = vmatmul.mubr.bf16.gmra.mrb[0].mxu0 %v1275
    %v1316 = vpop.f32.mrb[0].mxu0
    %v1317 = vadd.f32 0.0, %v1316
    %v1318 = vpop.f32.mrb[0].mxu0
    %v1319 = vadd.f32 0.0, %v1318
    %v1320 = vpop.f32.mrb[0].mxu0
    %v1321 = vpop.f32.mrb[0].mxu0
    %1322 = vdwg.mxu0
    %1323 = vmatprep.subr.bf16.mxu0 0
    %1324 = vmatpush1.bf16.msra.mxu0 %v467
    %1325 = vmatprep.subr.bf16.mxu0 0
    %1326 = vmatpush1.bf16.msra.mxu0 %v470
    %1327 = vmatprep.subr.bf16.mxu0 0
    %1328 = vmatpush1.bf16.msra.mxu0 %v473
    %1329 = vmatprep.subr.bf16.mxu0 0
    %1330 = vmatpush1.bf16.msra.mxu0 %v476
    %1331 = vmatprep.subr.bf16.mxu0 0
    %1332 = vmatpush1.bf16.msra.mxu0 %v479
    %1333 = vmatprep.subr.bf16.mxu0 0
    %1334 = vmatpush1.bf16.msra.mxu0 %v482
    %1335 = vmatprep.subr.bf16.mxu0 0
    %1336 = vmatpush1.bf16.msra.mxu0 %v485
    %1337 = vmatprep.subr.bf16.mxu0 0
    %1338 = vmatpush1.bf16.msra.mxu0 %v488
    %1339 = vmatprep.subr.bf16.mxu0 0
    %1340 = vmatpush1.bf16.msra.mxu0 0
    %1341 = vmatprep.subr.bf16.mxu0 0
    %1342 = vmatpush1.bf16.msra.mxu0 0
    %1343 = vmatprep.subr.bf16.mxu0 0
    %1344 = vmatpush1.bf16.msra.mxu0 0
    %1345 = vmatprep.subr.bf16.mxu0 0
    %1346 = vmatpush1.bf16.msra.mxu0 0
    %1347 = vmatprep.subr.bf16.mxu0 0
    %1348 = vmatpush1.bf16.msra.mxu0 0
    %1349 = vmatprep.subr.bf16.mxu0 0
    %1350 = vmatpush1.bf16.msra.mxu0 0
    %1351 = vmatprep.subr.bf16.mxu0 0
    %1352 = vmatpush1.bf16.msra.mxu0 0
    %1353 = vmatprep.subr.bf16.mxu0 0
    %1354 = vmatpush1.bf16.msra.mxu0 0
    %1355 = vmatprep.mubr.bf16.mxu0 0
    %1356 = vmatmul.mubr.bf16.gmra.mrb[0].mxu0 %v1275
    %v1357 = vpop.f32.mrb[0].mxu0
    %v1358 = vadd.f32 0.0, %v1357
    %v1359 = vpop.f32.mrb[0].mxu0
    %v1360 = vpop.f32.mrb[0].mxu0
    %v1361 = vpop.f32.mrb[0].mxu0
    %1362 = vdwg.mxu0
    %v1363 = vadd.f32 %v1279, %v1317
    %v1364 = vxor.u32 %v1363, 2147483648
    %v1365 = vmul.f32 %v1364, 1.442695
    %v1366 = vpow.pop %v1365
    %v1367 = vadd.f32 %v1366, 1.0
    %v1368 = vrcp.pop %v1367
    %v1369 = vmul.f32 1.0, %v1368
    %v1370 = vadd.f32 %v1280, %v1319
    %v1371 = vxor.u32 %v1370, 2147483648
    %v1372 = vmul.f32 %v1371, 1.442695
    %v1373 = vpow.pop %v1372
    %v1374 = vadd.f32 %v1373, 1.0
    %v1375 = vrcp.pop %v1374
    %v1376 = vmul.f32 1.0, %v1375
    %v1377 = vadd.f32 %v1358, %v380
    %v1378 = vmul.f32 %v1369, %v1377
    %v1379 = vadd.f32 %v1281, %v1378
    %v1380 = vtanh.pop %v1379
    %v1381 = vsub.f32 1.0, %v1376
    %v1382 = vmul.f32 %v1381, %v1380
    %v1383 = vmul.f32 %v1376, %v1274
    %v1384 = vadd.f32 %v1382, %v1383
    %v1385 = vpack.c.bf16 %v1384, %v1384
    %s1386 = scalar_lea.vmem [#allocation3], 28
    %1387 = vst [vmem:[%s1386] sm:$0xf] %v1385
    %v1388 = vld [vmem:[#allocation3] sm:$0xf]
    %v1389 = vld [vmem:[#allocation3 + $0x4] sm:$0xf]
    %v1390 = vld [vmem:[#allocation3 + $0x8] sm:$0xf]
    %v1391 = vld [vmem:[#allocation3 + $0xc] sm:$0xf]
    %v1392 = vld [vmem:[#allocation3 + $0x10] sm:$0xf]
    %v1393 = vld [vmem:[#allocation3 + $0x14] sm:$0xf]
    %v1394 = vld [vmem:[#allocation3 + $0x18] sm:$0xf]
    %v1395 = vld [vmem:[#allocation3 + $0x1c] sm:$0xf]
    %v1396 = vld [vmem:[#allocation10] sm:$0xf]
    %v1397 = vld [vmem:[#allocation10 + $0x4] sm:$0xf]
    %v1398 = vld [vmem:[#allocation10 + $0x8] sm:$0xf]
    %v1399 = vld [vmem:[#allocation10 + $0xc] sm:$0xf]
    %v1400 = vld [vmem:[#allocation10 + $0x10] sm:$0xf]
    %v1401 = vld [vmem:[#allocation10 + $0x14] sm:$0xf]
    %v1402 = vld [vmem:[#allocation10 + $0x18] sm:$0xf]
    %v1403 = vld [vmem:[#allocation10 + $0x1c] sm:$0xf]
    %v1404 = vld [vmem:[#allocation10 + $0x20] sm:$0xf]
    %v1405 = vld [vmem:[#allocation10 + $0x24] sm:$0xf]
    %v1406 = vld [vmem:[#allocation10 + $0x28] sm:$0xf]
    %v1407 = vld [vmem:[#allocation10 + $0x2c] sm:$0xf]
    %v1408 = vld [vmem:[#allocation10 + $0x30] sm:$0xf]
    %v1409 = vld [vmem:[#allocation10 + $0x34] sm:$0xf]
    %v1410 = vld [vmem:[#allocation10 + $0x38] sm:$0xf]
    %v1411 = vld [vmem:[#allocation10 + $0x3c] sm:$0xf]
    %v1412 = vld [vmem:[%s6] sm:$0x1]
    %v1414 = vlaneseq
    %v1415 = vshrl.u32 %v1414, 7
    %v1416 = vsub.s32 0, %v1415
    %v1417 = vrot.slane %v1412, %v1416
    %v1427 = vunpack.c.l.b16 %v1388
    %v1428 = vunpack.c.l.b16 %v1389
    %v1429 = vunpack.c.l.b16 %v1390
    %v1430 = vunpack.c.l.b16 %v1391
    %v1431 = vunpack.c.l.b16 %v1392
    %v1432 = vunpack.c.l.b16 %v1393
    %v1433 = vunpack.c.l.b16 %v1394
    %v1434 = vunpack.c.l.b16 %v1395
    %v1435 = vpack.c.b16 %v1428, %v1427
    %v1436 = vpack.c.b16 %v1430, %v1429
    %v1437 = vpack.c.b16 %v1432, %v1431
    %v1438 = vpack.c.b16 %v1434, %v1433
    %v1459 = vunpack.c.l.b16 %v1396
    %v1460 = vunpack.c.l.b16 %v1397
    %v1461 = vunpack.c.l.b16 %v1398
    %v1462 = vunpack.c.l.b16 %v1399
    %v1463 = vunpack.c.l.b16 %v1400
    %v1464 = vunpack.c.l.b16 %v1401
    %v1465 = vunpack.c.l.b16 %v1402
    %v1466 = vunpack.c.l.b16 %v1403
    %v1467 = vunpack.c.l.b16 %v1404
    %v1468 = vunpack.c.l.b16 %v1405
    %v1469 = vunpack.c.l.b16 %v1406
    %v1470 = vunpack.c.l.b16 %v1407
    %v1471 = vunpack.c.l.b16 %v1408
    %v1472 = vunpack.c.l.b16 %v1409
    %v1473 = vunpack.c.l.b16 %v1410
    %v1474 = vunpack.c.l.b16 %v1411
    %v1475 = vpack.c.b16 %v1460, %v1459
    %v1476 = vpack.c.b16 %v1462, %v1461
    %v1477 = vpack.c.b16 %v1464, %v1463
    %v1478 = vpack.c.b16 %v1466, %v1465
    %v1479 = vpack.c.b16 %v1468, %v1467
    %v1480 = vpack.c.b16 %v1470, %v1469
    %v1481 = vpack.c.b16 %v1472, %v1471
    %v1482 = vpack.c.b16 %v1474, %v1473
    %1491 = vmatprep.subr.bf16.mxu0 0
    %1492 = vmatpush1.bf16.msra.mxu0 %v1475
    %1493 = vmatprep.subr.bf16.mxu0 0
    %1494 = vmatpush1.bf16.msra.mxu0 %v1476
    %1495 = vmatprep.subr.bf16.mxu0 0
    %1496 = vmatpush1.bf16.msra.mxu0 %v1477
    %1497 = vmatprep.subr.bf16.mxu0 0
    %1498 = vmatpush1.bf16.msra.mxu0 %v1478
    %1499 = vmatprep.subr.bf16.mxu0 0
    %1500 = vmatpush1.bf16.msra.mxu0 %v1479
    %1501 = vmatprep.subr.bf16.mxu0 0
    %1502 = vmatpush1.bf16.msra.mxu0 %v1480
    %1503 = vmatprep.subr.bf16.mxu0 0
    %1504 = vmatpush1.bf16.msra.mxu0 %v1481
    %1505 = vmatprep.subr.bf16.mxu0 0
    %1506 = vmatpush1.bf16.msra.mxu0 %v1482
    %1507 = vmatprep.subr.bf16.mxu0 0
    %1508 = vmatpush1.bf16.msra.mxu0 0
    %1509 = vmatprep.subr.bf16.mxu0 0
    %1510 = vmatpush1.bf16.msra.mxu0 0
    %1511 = vmatprep.subr.bf16.mxu0 0
    %1512 = vmatpush1.bf16.msra.mxu0 0
    %1513 = vmatprep.subr.bf16.mxu0 0
    %1514 = vmatpush1.bf16.msra.mxu0 0
    %1515 = vmatprep.subr.bf16.mxu0 0
    %1516 = vmatpush1.bf16.msra.mxu0 0
    %1517 = vmatprep.subr.bf16.mxu0 0
    %1518 = vmatpush1.bf16.msra.mxu0 0
    %1519 = vmatprep.subr.bf16.mxu0 0
    %1520 = vmatpush1.bf16.msra.mxu0 0
    %1521 = vmatprep.subr.bf16.mxu0 0
    %1522 = vmatpush1.bf16.msra.mxu0 0
    %1523 = vmatprep.mubr.bf16.mxu0 0
    %1524 = vmatmul.mubr.bf16.gmra.mrb[0].mxu0 %v1435
    %v1525 = vpop.f32.mrb[0].mxu0
    %v1526 = vadd.f32 %v1417, %v1525
    %v1527 = vpop.f32.mrb[0].mxu0
    %v1528 = vpop.f32.mrb[0].mxu0
    %v1529 = vadd.f32 %v1417, %v1528
    %v1530 = vpop.f32.mrb[0].mxu0
    %1531 = vmatprep.mubr.bf16.mxu0 0
    %1532 = vmatmul.mubr.bf16.gmra.mrb[0].mxu0 %v1436
    %v1533 = vpop.f32.mrb[0].mxu0
    %v1534 = vadd.f32 %v1417, %v1533
    %v1535 = vpop.f32.mrb[0].mxu0
    %v1536 = vpop.f32.mrb[0].mxu0
    %v1537 = vadd.f32 %v1417, %v1536
    %v1538 = vpop.f32.mrb[0].mxu0
    %1539 = vmatprep.mubr.bf16.mxu0 0
    %1540 = vmatmul.mubr.bf16.gmra.mrb[0].mxu0 %v1437
    %v1541 = vpop.f32.mrb[0].mxu0
    %v1542 = vadd.f32 %v1417, %v1541
    %v1543 = vpop.f32.mrb[0].mxu0
    %v1544 = vpop.f32.mrb[0].mxu0
    %v1545 = vadd.f32 %v1417, %v1544
    %v1546 = vpop.f32.mrb[0].mxu0
    %1547 = vmatprep.mubr.bf16.mxu0 0
    %1548 = vmatmul.mubr.bf16.gmra.mrb[0].mxu0 %v1438
    %v1549 = vpop.f32.mrb[0].mxu0
    %v1550 = vadd.f32 %v1417, %v1549
    %v1551 = vpop.f32.mrb[0].mxu0
    %v1552 = vpop.f32.mrb[0].mxu0
    %v1553 = vadd.f32 %v1417, %v1552
    %v1554 = vpop.f32.mrb[0].mxu0
    %1555 = vdwg.mxu0
    %1556 = vst [vmem:[#allocation12] sm:$0xff] %v1526
    %1557 = vst [vmem:[#allocation12 + $0x8] sm:$0xff] %v1529
    %1558 = vst [vmem:[#allocation12 + $0x10] sm:$0xff] %v1534
    %1559 = vst [vmem:[#allocation12 + $0x18] sm:$0xff] %v1537
    %1560 = vst [vmem:[#allocation12 + $0x20] sm:$0xff] %v1542
    %1561 = vst [vmem:[#allocation12 + $0x28] sm:$0xff] %v1545
    %1562 = vst [vmem:[#allocation12 + $0x30] sm:$0xff] %v1550
    %1563 = vst [vmem:[#allocation12 + $0x38] sm:$0xff] %v1553
    // Predicated region
    $region46: #{tpu_custom_call.1} parent=1 // pred_check
      _
    $region47: #{tpu_custom_call.1} parent=1 // pred_check_branch
      %1565 = sbr.rel (0) target = $region49
    $region48: #{tpu_custom_call.1} parent=1 // pred_region
      %s1567 = ssub.s32 1024, 1024
      %1568 = vsyncadd [#allocation6], %s1567
      %s1569 = sshll.u32 [#allocation12], 4
      %s1570 = int_to_ptr.vmem [resolvable:$true] %s1569
      %1575 = dma.vmem_to_hbm [thread:$0]  %s1570, 1024, %s7, [#allocation6], 128, 128, 8
    $region49: #{tpu_custom_call.1} parent=1 // pred_fallthru
      _
    // Predicated region
    $region50: #{tpu_custom_call.1} parent=1 // pred_check
      _
    $region51: #{tpu_custom_call.1} parent=1 // pred_check_branch
      %1577 = sbr.rel (0) target = $region53
    $region52: #{tpu_custom_call.1} parent=1 // pred_region
      %1578 = dma.done [#allocation6], 1024
    $region53: #{tpu_custom_call.1} parent=1 // pred_fallthru
      _
    %1579 = vsyncpa [#allocation5], 1
    %1580 = vsyncpa [#allocation8], 1
    %1581 = vsyncpa [#allocation11], 1
    %1582 = vsyncpa [#allocation6], 1

</llo_original>
